<compile_context>
chip_gen: v7x
topology: tpu7x:2x2x1
jax: 0.10.0
libtpu: 0.0.40
codegen_flags: <defaults>
</compile_context>

<pallas_src>
import functools

import jax
import jax.numpy as jnp
import numpy as np
from jax import lax
from jax.experimental import pallas as pl
from jax.experimental.pallas import tpu as pltpu


def encoder_block_kernel(x_ref, ln1_g_ref, ln1_b_ref, wqkv_ref, bqkv_ref,
                         wo_ref, bo_ref, ln2_g_ref, ln2_b_ref,
                         w1_ref, b1_ref, w2_ref, b2_ref, out_ref, *scratch,
                         heads, q_tile, n_valid):
    """One grid step == one batch element.  Everything lives in VMEM."""
    f32 = jnp.float32
    bf16 = jnp.bfloat16

    x_in = x_ref[0].astype(f32)                       # (Np, D)
    n_pad, D = x_in.shape
    dh = D // heads
    eps = 1e-5

    def layer_norm(v, g_ref, b_ref):
        # Single pass: one sweep computing E[x] and E[x^2].
        mu = jnp.mean(v, axis=-1, keepdims=True)
        ms = jnp.mean(v * v, axis=-1, keepdims=True)
        var = jnp.maximum(ms - mu * mu, 0.0)
        return (v - mu) * lax.rsqrt(var + eps) * g_ref[...] + b_ref[...]

    # ---- attention branch: x = attn(LN(inputs)) + inputs --------------------
    xn = layer_norm(x_in, ln1_g_ref, ln1_b_ref)
    # Head-major QKV projection: batched (H) matmuls, bf16 in / f32 acc.  The
    # 1/sqrt(dh) scale is already folded into the q columns of wqkv/bqkv.
    xh = jnp.broadcast_to(xn.astype(bf16), (heads, n_pad, D))
    qkv = jnp.einsum('hnd,hdk->hnk', xh, wqkv_ref[...],
                     preferred_element_type=f32) + bqkv_ref[...]  # (H, Np, 3dh)
    qh = qkv[:, :, 0 * dh:1 * dh].astype(bf16)
    kh = qkv[:, :, 1 * dh:2 * dh].astype(bf16)
    vh = qkv[:, :, 2 * dh:3 * dh].astype(bf16)
    wo = wo_ref[...]                                  # (H, dh, D) bf16

    # Key mask is only needed when the sequence was padded for q-tiling.
    key_ok = None
    if n_valid < n_pad:
        key_ok = lax.broadcasted_iota(jnp.int32, (1, 1, n_pad), 2) < n_valid

    def attend(qt):
        """(H, t, dh) q-tile -> (t, D) pre-bias attention output."""
        s = jnp.einsum('hqd,hkd->hqk', qt, kh, preferred_element_type=f32)
        if key_ok is not None:
            s = jnp.where(key_ok, s, -1e30)
        s = s - jnp.max(s, axis=-1, keepdims=True)
        e = jnp.exp(s)
        p = e * pl.reciprocal(jnp.sum(e, axis=-1, keepdims=True), approx=True)
        c = jnp.einsum('hqk,hkd->hqd', p.astype(bf16), vh,
                       preferred_element_type=f32)    # (H, t, dh)
        # Per-head output projection (wo_h is (H, dh, D)) + sum over heads:
        # no head concat / lane relayout needed.
        o = jnp.einsum('hqd,hdk->hqk', c.astype(bf16), wo,
                       preferred_element_type=f32)    # (H, t, D)
        return jnp.sum(o, axis=0)                     # (t, D)

    if q_tile >= n_pad:
        # Short sequences: straight-line path (no scratch needed).
        attn = attend(qh)
    else:
        # Long sequences: bound the (H, tq, Np) scores/probs by looping over
        # aligned q-row tiles (last tile start clamps & overlaps; rows are
        # recomputed identically so overlapping writes are safe).
        qh_scr, attn_scr = scratch
        qh_scr[...] = qh
        n_tiles = pl.cdiv(n_pad, q_tile)

        def q_step(i, carry):
            start = jnp.minimum(i * q_tile, n_pad - q_tile)
            start = pl.multiple_of(start, 8)
            attn_scr[pl.ds(start, q_tile), :] = attend(
                qh_scr[:, pl.ds(start, q_tile), :])
            return carry

        lax.fori_loop(0, n_tiles, q_step, 0)
        attn = attn_scr[...]

    # to_out bias + attention dropout (identity) + residual.
    xres = attn + bo_ref[...] + x_in

    # ---- MLP branch: out = x + MLP(LN(x)) ------------------------------------
    yn = layer_norm(xres, ln2_g_ref, ln2_b_ref)
    h1 = jnp.dot(yn.astype(bf16), w1_ref[...],
                 preferred_element_type=f32) + b1_ref[...]
    h1 = jnp.maximum(h1, 0.0)                         # ReLU (dropout = identity)
    y = jnp.dot(h1.astype(bf16), w2_ref[...],
                preferred_element_type=f32) + b2_ref[...]

    out_ref[0] = (xres + y).astype(out_ref.dtype)


def _prepare_weights(params, heads):
    """Host-side (one-time) weight prep:
       * matmul weights -> bf16 (MXU peak, half the DMA/VMEM traffic),
       * QKV / output-projection weights re-laid head-major,
       * 1/sqrt(dh) folded into the q columns."""
    f32, bf16 = jnp.float32, jnp.bfloat16
    D = params['wo'].shape[0]
    dh = D // heads
    scale = (D / heads) ** (-0.5)

    wqkv = params['wqkv'].astype(f32)                 # (D, 3D) = [q | k | v]
    bqkv = params['bqkv'].astype(f32).reshape(3 * D)

    def w_heads(w2d, s):                              # (D, D) -> (H, D, dh)
        return (w2d.reshape(D, heads, dh) * s).transpose(1, 0, 2)

    def b_heads(b1d, s):                              # (D,)   -> (H, 1, dh)
        return (b1d.reshape(heads, dh) * s)[:, None, :]

    wqkv_h = jnp.concatenate([w_heads(wqkv[:, :D], scale),
                              w_heads(wqkv[:, D:2 * D], 1.0),
                              w_heads(wqkv[:, 2 * D:], 1.0)], axis=-1)
    bqkv_h = jnp.concatenate([b_heads(bqkv[:D], scale),
                              b_heads(bqkv[D:2 * D], 1.0),
                              b_heads(bqkv[2 * D:], 1.0)], axis=-1)
    wo_h = params['wo'].reshape(heads, dh, D)         # rows are head-major

    return [
        params['ln1_g'].astype(f32), params['ln1_b'].astype(f32),
        wqkv_h.astype(bf16), bqkv_h.astype(f32),
        wo_h.astype(bf16), params['bo'].astype(f32),
        params['ln2_g'].astype(f32), params['ln2_b'].astype(f32),
        params['w1'].astype(bf16), params['b1'].astype(f32),
        params['w2'].astype(bf16), params['b2'].astype(f32),
    ]


_FALLBACK_ERRORS = (TypeError, ValueError, NotImplementedError,
                    getattr(pltpu, "LoweringException", TypeError))


def encoder1d_block(x, params, heads, *, max_q_tile=256):
    B, N, D = x.shape
    assert D % heads == 0
    dh = D // heads
    mlp_dim = params['w1'].shape[1]
    weights = _prepare_weights(params, heads)
    w_bytes = sum(int(np.prod(w.shape)) * w.dtype.itemsize for w in weights)

    # ---- VMEM capacity / footprint bookkeeping (v7x has only 64 MiB) --------
    try:
        vmem_cap = int(pltpu.get_tpu_info().vmem_capacity_bytes)
    except Exception:                                  # host-side query only
        vmem_cap = 64 * 2**20
    cap = max(32 * 2**20, int(0.85 * vmem_cap))        # 10-15% compiler headroom

    def footprint(tq, n_pad):
        tq = min(tq, n_pad)
        act = 4 * (heads * n_pad * 3 * dh              # qkv (H,Np,3dh) f32
                   + 3 * heads * tq * n_pad            # scores / exp / probs
                   + heads * tq * (dh + D)             # ctx + per-head out-proj
                   + 7 * n_pad * D                     # LN outs/residuals/attn
                   + 2 * n_pad * mlp_dim)              # MLP hidden
        act += 2 * heads * n_pad * (D + 3 * dh)        # bf16 broadcast + q/k/v
        return w_bytes + act + 4 * x.dtype.itemsize * n_pad * D

    # ---- choose a q-tile so the (H, tq, Np) score tensors fit VMEM ---------
    n_pad8 = ((N + 7) // 8) * 8
    q_tile = N
    if N > max_q_tile:
        q_tile = max_q_tile
        while q_tile > 64 and footprint(q_tile, n_pad8) > cap:
            q_tile //= 2
    tiled = q_tile < N
    n_pad = n_pad8 if tiled else N
    x_padded = x if n_pad == N else jnp.pad(x, ((0, 0), (0, n_pad - N), (0, 0)))

    estimate = footprint(q_tile, n_pad)
    vmem_limit = int(min(cap, max(32 * 2**20, int(1.5 * estimate))))

    scratch_shapes = []
    if tiled:
        scratch_shapes = [pltpu.VMEM((heads, n_pad, dh), jnp.bfloat16),
                          pltpu.VMEM((n_pad, D), jnp.float32)]

    kernel = functools.partial(encoder_block_kernel, heads=heads,
                               q_tile=min(q_tile, n_pad), n_valid=N)

    def weight_spec(arr, single_buffer):
        idx = lambda b, _nd=arr.ndim: (0,) * _nd
        if single_buffer:
            # Grid-invariant weights: one resident VMEM buffer (no pointless
            # double-buffering of 10s of MB at real ViT sizes).
            return pl.BlockSpec(arr.shape, idx, pipeline_mode=pl.Buffered(1))
        return pl.BlockSpec(arr.shape, idx)

    def run(single_buffer_weights):
        call = pl.pallas_call(
            kernel,
            out_shape=jax.ShapeDtypeStruct((B, n_pad, D), x.dtype),
            grid_spec=pltpu.PrefetchScalarGridSpec(
                num_scalar_prefetch=0,
                grid=(B,),
                in_specs=([pl.BlockSpec((1, n_pad, D), lambda b: (b, 0, 0))]
                          + [weight_spec(w, single_buffer_weights)
                             for w in weights]),
                out_specs=pl.BlockSpec((1, n_pad, D), lambda b: (b, 0, 0)),
                scratch_shapes=scratch_shapes),
            compiler_params=pltpu.CompilerParams(
                dimension_semantics=("parallel",),
                vmem_limit_bytes=vmem_limit),
        )
        return jax.block_until_ready(call(x_padded, *weights))

    try:
        out = run(True)
    except _FALLBACK_ERRORS:
        # Narrow fallback: only Buffered(1) construction / lowering rejections
        # land here; runtime failures (e.g. VMEM OOM) surface to the caller.
        out = run(False)

    return out[:, :N, :] if n_pad != N else out


def init_params(key, dim, mlp_dim):
    ks = jax.random.split(key, 6)
    s = 0.02
    return {
        'ln1_g': jnp.ones((1, dim), jnp.float32),
        'ln1_b': jnp.zeros((1, dim), jnp.float32),
        'wqkv': s * jax.random.normal(ks[0], (dim, 3 * dim), jnp.float32),
        'bqkv': s * jax.random.normal(ks[1], (1, 3 * dim), jnp.float32),
        'wo':   s * jax.random.normal(ks[2], (dim, dim), jnp.float32),
        'bo':   s * jax.random.normal(ks[3], (1, dim), jnp.float32),
        'ln2_g': jnp.ones((1, dim), jnp.float32),
        'ln2_b': jnp.zeros((1, dim), jnp.float32),
        'w1':   s * jax.random.normal(ks[4], (dim, mlp_dim), jnp.float32),
        'b1':   jnp.zeros((1, mlp_dim), jnp.float32),
        'w2':   s * jax.random.normal(ks[5], (mlp_dim, dim), jnp.float32),
        'b2':   jnp.zeros((1, dim), jnp.float32),
    }


def reference_forward(x, p, heads):
    """Plain-JAX f32 reference mirroring the PyTorch forward (eval mode)."""
    def ln(v, g, b):
        mu = jnp.mean(v, -1, keepdims=True)
        var = jnp.mean((v - mu) ** 2, -1, keepdims=True)
        return (v - mu) / jnp.sqrt(var + 1e-5) * g + b

    B, N, D = x.shape
    dh = D // heads
    xn = ln(x, p['ln1_g'][0], p['ln1_b'][0])
    qkv = xn @ p['wqkv'] + p['bqkv'][0]
    q, k, v = jnp.split(qkv, 3, axis=-1)
    rs = lambda t: t.reshape(B, N, heads, dh).transpose(0, 2, 1, 3)
    q, k, v = rs(q), rs(k), rs(v)
    dots = jnp.einsum('bhid,bhjd->bhij', q, k) * (D / heads) ** (-0.5)
    attn = jax.nn.softmax(dots, axis=-1)
    out = jnp.einsum('bhij,bhjd->bhid', attn, v)
    out = out.transpose(0, 2, 1, 3).reshape(B, N, D)
    out = out @ p['wo'] + p['bo'][0]
    xres = out + x
    yn = ln(xres, p['ln2_g'][0], p['ln2_b'][0])
    y = jnp.maximum(yn @ p['w1'] + p['b1'][0], 0.0) @ p['w2'] + p['b2'][0]
    return xres + y


if __name__ == "__main__":
    B, N, D, HEADS, MLP = 2, 8, 32, 4, 64
    key = jax.random.PRNGKey(0)
    kx, kp = jax.random.split(key)
    x = jax.random.normal(kx, (B, N, D), jnp.float32)
    params = init_params(kp, D, MLP)

    out = jax.block_until_ready(encoder1d_block(x, params, HEADS))

    # Kernel matmuls run in bf16 (f32 accumulation) and the softmax denominator
    # uses pl.reciprocal(approx=True) (~2^-12 rel. error); compare against the
    # f32 reference with a bf16-appropriate tolerance.
    ref = reference_forward(x, params, HEADS)
    np.testing.assert_allclose(np.asarray(out, dtype=np.float32),
                               np.asarray(ref), rtol=2e-2, atol=2e-2)
    print("KERNEL_OK")
</pallas_src>

<mosaic_0001>
module attributes {stable_mosaic.version = 11 : i64} {
  func.func @encoder_block_kernel(%arg0: i32, %arg1: memref<1x8x32xf32, #tpu.memory_space<vmem>>, %arg2: memref<1x32xf32, #tpu.memory_space<vmem>>, %arg3: memref<1x32xf32, #tpu.memory_space<vmem>>, %arg4: memref<4x32x24xbf16, #tpu.memory_space<vmem>>, %arg5: memref<4x1x24xf32, #tpu.memory_space<vmem>>, %arg6: memref<4x8x32xbf16, #tpu.memory_space<vmem>>, %arg7: memref<1x32xf32, #tpu.memory_space<vmem>>, %arg8: memref<1x32xf32, #tpu.memory_space<vmem>>, %arg9: memref<1x32xf32, #tpu.memory_space<vmem>>, %arg10: memref<32x64xbf16, #tpu.memory_space<vmem>>, %arg11: memref<1x64xf32, #tpu.memory_space<vmem>>, %arg12: memref<64x32xbf16, #tpu.memory_space<vmem>>, %arg13: memref<1x32xf32, #tpu.memory_space<vmem>>, %arg14: memref<1x8x32xf32, #tpu.memory_space<vmem>>) attributes {dimension_semantics = [#tpu.dimension_semantics<parallel>], iteration_bounds = array<i64: 2>, scalar_prefetch = 0 : i64, scratch_operands = 0 : i64, tpu.core_type = #tpu.core_type<tc>, window_params = [{transform_indices = @transform_0, window_bounds = array<i64: 1, 8, 32>}, {pipeline_mode = #tpu.pipeline_mode<synchronous>, transform_indices = @transform_1, window_bounds = array<i64: 1, 32>}, {pipeline_mode = #tpu.pipeline_mode<synchronous>, transform_indices = @transform_2, window_bounds = array<i64: 1, 32>}, {pipeline_mode = #tpu.pipeline_mode<synchronous>, transform_indices = @transform_3, window_bounds = array<i64: 4, 32, 24>}, {pipeline_mode = #tpu.pipeline_mode<synchronous>, transform_indices = @transform_4, window_bounds = array<i64: 4, 1, 24>}, {pipeline_mode = #tpu.pipeline_mode<synchronous>, transform_indices = @transform_5, window_bounds = array<i64: 4, 8, 32>}, {pipeline_mode = #tpu.pipeline_mode<synchronous>, transform_indices = @transform_6, window_bounds = array<i64: 1, 32>}, {pipeline_mode = #tpu.pipeline_mode<synchronous>, transform_indices = @transform_7, window_bounds = array<i64: 1, 32>}, {pipeline_mode = #tpu.pipeline_mode<synchronous>, transform_indices = @transform_8, window_bounds = array<i64: 1, 32>}, {pipeline_mode = #tpu.pipeline_mode<synchronous>, transform_indices = @transform_9, window_bounds = array<i64: 32, 64>}, {pipeline_mode = #tpu.pipeline_mode<synchronous>, transform_indices = @transform_10, window_bounds = array<i64: 1, 64>}, {pipeline_mode = #tpu.pipeline_mode<synchronous>, transform_indices = @transform_11, window_bounds = array<i64: 64, 32>}, {pipeline_mode = #tpu.pipeline_mode<synchronous>, transform_indices = @transform_12, window_bounds = array<i64: 1, 32>}, {transform_indices = @transform_13, window_bounds = array<i64: 1, 8, 32>}]} {
    %c0 = arith.constant 0 : index
    %c0_0 = arith.constant 0 : index
    %c0_1 = arith.constant 0 : index
    %0 = vector.load %arg1[%c0, %c0_0, %c0_1] : memref<1x8x32xf32, #tpu.memory_space<vmem>>, vector<1x8x32xf32>
    %1 = vector.shape_cast %0 : vector<1x8x32xf32> to vector<8x32xf32>
    %cst = arith.constant dense<0.000000e+00> : vector<8xf32>
    %2 = vector.multi_reduction <add>, %1, %cst [1] : vector<8x32xf32> to vector<8xf32>
    %3 = vector.shape_cast %2 : vector<8xf32> to vector<8x1xf32>
    %cst_2 = arith.constant 3.200000e+01 : f32
    %4 = vector.broadcast %cst_2 : f32 to vector<8x1xf32>
    %5 = arith.divf %3, %4 : vector<8x1xf32>
    %6 = arith.mulf %1, %1 : vector<8x32xf32>
    %cst_3 = arith.constant dense<0.000000e+00> : vector<8xf32>
    %7 = vector.multi_reduction <add>, %6, %cst_3 [1] : vector<8x32xf32> to vector<8xf32>
    %8 = vector.shape_cast %7 : vector<8xf32> to vector<8x1xf32>
    %cst_4 = arith.constant 3.200000e+01 : f32
    %9 = vector.broadcast %cst_4 : f32 to vector<8x1xf32>
    %10 = arith.divf %8, %9 : vector<8x1xf32>
    %11 = arith.mulf %5, %5 : vector<8x1xf32>
    %12 = arith.subf %10, %11 : vector<8x1xf32>
    %cst_5 = arith.constant 0.000000e+00 : f32
    %13 = vector.broadcast %cst_5 : f32 to vector<8x1xf32>
    %14 = arith.maximumf %12, %13 : vector<8x1xf32>
    %15 = vector.broadcast %5 : vector<8x1xf32> to vector<8x32xf32>
    %16 = arith.subf %1, %15 : vector<8x32xf32>
    %cst_6 = arith.constant 9.99999974E-6 : f32
    %17 = vector.broadcast %cst_6 : f32 to vector<8x1xf32>
    %18 = arith.addf %14, %17 : vector<8x1xf32>
    %19 = math.rsqrt %18 : vector<8x1xf32>
    %20 = vector.broadcast %19 : vector<8x1xf32> to vector<8x32xf32>
    %21 = arith.mulf %16, %20 : vector<8x32xf32>
    %c0_7 = arith.constant 0 : index
    %c0_8 = arith.constant 0 : index
    %22 = vector.load %arg2[%c0_7, %c0_8] : memref<1x32xf32, #tpu.memory_space<vmem>>, vector<1x32xf32>
    %23 = vector.broadcast %22 : vector<1x32xf32> to vector<8x32xf32>
    %24 = arith.mulf %21, %23 : vector<8x32xf32>
    %c0_9 = arith.constant 0 : index
    %c0_10 = arith.constant 0 : index
    %25 = vector.load %arg3[%c0_9, %c0_10] : memref<1x32xf32, #tpu.memory_space<vmem>>, vector<1x32xf32>
    %26 = vector.broadcast %25 : vector<1x32xf32> to vector<8x32xf32>
    %27 = arith.addf %24, %26 : vector<8x32xf32>
    %28 = arith.truncf %27 : vector<8x32xf32> to vector<8x32xbf16>
    %29 = vector.shape_cast %28 : vector<8x32xbf16> to vector<1x8x32xbf16>
    %30 = vector.broadcast %29 : vector<1x8x32xbf16> to vector<4x8x32xbf16>
    %c0_11 = arith.constant 0 : index
    %c0_12 = arith.constant 0 : index
    %c0_13 = arith.constant 0 : index
    %31 = vector.load %arg4[%c0_11, %c0_12, %c0_13] : memref<4x32x24xbf16, #tpu.memory_space<vmem>>, vector<4x32x24xbf16>
    "tpu.trace_start"() <{level = 10 : i32, message = "hnd,hdk->hnk"}> : () -> ()
    %cst_14 = arith.constant dense<0.000000e+00> : vector<4x8x24xf32>
    %32 = tpu.matmul %30, %31, %cst_14 {dimension_numbers = #tpu.dot_dimension_numbers<[2], [1], [1], [2], [0, 0, 0, 1, 1, 2], [0], [0]>} : vector<4x8x32xbf16>, vector<4x32x24xbf16>, vector<4x8x24xf32> -> vector<4x8x24xf32>
    "tpu.trace_stop"() : () -> ()
    %c0_15 = arith.constant 0 : index
    %c0_16 = arith.constant 0 : index
    %c0_17 = arith.constant 0 : index
    %33 = vector.load %arg5[%c0_15, %c0_16, %c0_17] : memref<4x1x24xf32, #tpu.memory_space<vmem>>, vector<4x1x24xf32>
    %34 = vector.broadcast %33 : vector<4x1x24xf32> to vector<4x8x24xf32>
    %35 = arith.addf %32, %34 : vector<4x8x24xf32>
    %36 = vector.extract_strided_slice %35 {offsets = [0, 0, 0], sizes = [4, 8, 8], strides = [1, 1, 1]} : vector<4x8x24xf32> to vector<4x8x8xf32>
    %37 = arith.truncf %36 : vector<4x8x8xf32> to vector<4x8x8xbf16>
    %38 = vector.extract_strided_slice %35 {offsets = [0, 0, 8], sizes = [4, 8, 8], strides = [1, 1, 1]} : vector<4x8x24xf32> to vector<4x8x8xf32>
    %39 = arith.truncf %38 : vector<4x8x8xf32> to vector<4x8x8xbf16>
    %40 = vector.extract_strided_slice %35 {offsets = [0, 0, 16], sizes = [4, 8, 8], strides = [1, 1, 1]} : vector<4x8x24xf32> to vector<4x8x8xf32>
    %41 = arith.truncf %40 : vector<4x8x8xf32> to vector<4x8x8xbf16>
    %c0_18 = arith.constant 0 : index
    %c0_19 = arith.constant 0 : index
    %c0_20 = arith.constant 0 : index
    %42 = vector.load %arg6[%c0_18, %c0_19, %c0_20] : memref<4x8x32xbf16, #tpu.memory_space<vmem>>, vector<4x8x32xbf16>
    "tpu.trace_start"() <{level = 10 : i32, message = "hqd,hkd->hqk"}> : () -> ()
    %cst_21 = arith.constant dense<0.000000e+00> : vector<4x8x8xf32>
    %43 = tpu.matmul %37, %39, %cst_21 {dimension_numbers = #tpu.dot_dimension_numbers<[2], [2], [1], [1], [0, 0, 0, 1, 1, 1], [0], [0]>} : vector<4x8x8xbf16>, vector<4x8x8xbf16>, vector<4x8x8xf32> -> vector<4x8x8xf32>
    "tpu.trace_stop"() : () -> ()
    %cst_22 = arith.constant dense<0xFF800000> : vector<4x8xf32>
    %44 = vector.multi_reduction <maximumf>, %43, %cst_22 [2] : vector<4x8x8xf32> to vector<4x8xf32>
    %45 = vector.shape_cast %44 : vector<4x8xf32> to vector<4x8x1xf32>
    %46 = vector.broadcast %45 : vector<4x8x1xf32> to vector<4x8x8xf32>
    %47 = arith.subf %43, %46 : vector<4x8x8xf32>
    %48 = math.exp %47 : vector<4x8x8xf32>
    %cst_23 = arith.constant dense<0.000000e+00> : vector<4x8xf32>
    %49 = vector.multi_reduction <add>, %48, %cst_23 [2] : vector<4x8x8xf32> to vector<4x8xf32>
    %50 = vector.shape_cast %49 : vector<4x8xf32> to vector<4x8x1xf32>
    %51 = tpu.reciprocal %50 {approx = true} : vector<4x8x1xf32> -> vector<4x8x1xf32>
    %52 = vector.broadcast %51 : vector<4x8x1xf32> to vector<4x8x8xf32>
    %53 = arith.mulf %48, %52 : vector<4x8x8xf32>
    %54 = arith.truncf %53 : vector<4x8x8xf32> to vector<4x8x8xbf16>
    "tpu.trace_start"() <{level = 10 : i32, message = "hqk,hkd->hqd"}> : () -> ()
    %cst_24 = arith.constant dense<0.000000e+00> : vector<4x8x8xf32>
    %55 = tpu.matmul %54, %41, %cst_24 {dimension_numbers = #tpu.dot_dimension_numbers<[2], [1], [1], [2], [0, 0, 0, 1, 1, 2], [0], [0]>} : vector<4x8x8xbf16>, vector<4x8x8xbf16>, vector<4x8x8xf32> -> vector<4x8x8xf32>
    "tpu.trace_stop"() : () -> ()
    %56 = arith.truncf %55 : vector<4x8x8xf32> to vector<4x8x8xbf16>
    "tpu.trace_start"() <{level = 10 : i32, message = "hqd,hdk->hqk"}> : () -> ()
    %cst_25 = arith.constant dense<0.000000e+00> : vector<4x8x32xf32>
    %57 = tpu.matmul %56, %42, %cst_25 {dimension_numbers = #tpu.dot_dimension_numbers<[2], [1], [1], [2], [0, 0, 0, 1, 1, 2], [0], [0]>} : vector<4x8x8xbf16>, vector<4x8x32xbf16>, vector<4x8x32xf32> -> vector<4x8x32xf32>
    "tpu.trace_stop"() : () -> ()
    %cst_26 = arith.constant dense<0.000000e+00> : vector<8x32xf32>
    %58 = vector.multi_reduction <add>, %57, %cst_26 [0] : vector<4x8x32xf32> to vector<8x32xf32>
    %c0_27 = arith.constant 0 : index
    %c0_28 = arith.constant 0 : index
    %59 = vector.load %arg7[%c0_27, %c0_28] : memref<1x32xf32, #tpu.memory_space<vmem>>, vector<1x32xf32>
    %60 = vector.broadcast %59 : vector<1x32xf32> to vector<8x32xf32>
    %61 = arith.addf %58, %60 : vector<8x32xf32>
    %62 = arith.addf %61, %1 : vector<8x32xf32>
    %cst_29 = arith.constant dense<0.000000e+00> : vector<8xf32>
    %63 = vector.multi_reduction <add>, %62, %cst_29 [1] : vector<8x32xf32> to vector<8xf32>
    %64 = vector.shape_cast %63 : vector<8xf32> to vector<8x1xf32>
    %cst_30 = arith.constant 3.200000e+01 : f32
    %65 = vector.broadcast %cst_30 : f32 to vector<8x1xf32>
    %66 = arith.divf %64, %65 : vector<8x1xf32>
    %67 = arith.mulf %62, %62 : vector<8x32xf32>
    %cst_31 = arith.constant dense<0.000000e+00> : vector<8xf32>
    %68 = vector.multi_reduction <add>, %67, %cst_31 [1] : vector<8x32xf32> to vector<8xf32>
    %69 = vector.shape_cast %68 : vector<8xf32> to vector<8x1xf32>
    %cst_32 = arith.constant 3.200000e+01 : f32
    %70 = vector.broadcast %cst_32 : f32 to vector<8x1xf32>
    %71 = arith.divf %69, %70 : vector<8x1xf32>
    %72 = arith.mulf %66, %66 : vector<8x1xf32>
    %73 = arith.subf %71, %72 : vector<8x1xf32>
    %cst_33 = arith.constant 0.000000e+00 : f32
    %74 = vector.broadcast %cst_33 : f32 to vector<8x1xf32>
    %75 = arith.maximumf %73, %74 : vector<8x1xf32>
    %76 = vector.broadcast %66 : vector<8x1xf32> to vector<8x32xf32>
    %77 = arith.subf %62, %76 : vector<8x32xf32>
    %cst_34 = arith.constant 9.99999974E-6 : f32
    %78 = vector.broadcast %cst_34 : f32 to vector<8x1xf32>
    %79 = arith.addf %75, %78 : vector<8x1xf32>
    %80 = math.rsqrt %79 : vector<8x1xf32>
    %81 = vector.broadcast %80 : vector<8x1xf32> to vector<8x32xf32>
    %82 = arith.mulf %77, %81 : vector<8x32xf32>
    %c0_35 = arith.constant 0 : index
    %c0_36 = arith.constant 0 : index
    %83 = vector.load %arg8[%c0_35, %c0_36] : memref<1x32xf32, #tpu.memory_space<vmem>>, vector<1x32xf32>
    %84 = vector.broadcast %83 : vector<1x32xf32> to vector<8x32xf32>
    %85 = arith.mulf %82, %84 : vector<8x32xf32>
    %c0_37 = arith.constant 0 : index
    %c0_38 = arith.constant 0 : index
    %86 = vector.load %arg9[%c0_37, %c0_38] : memref<1x32xf32, #tpu.memory_space<vmem>>, vector<1x32xf32>
    %87 = vector.broadcast %86 : vector<1x32xf32> to vector<8x32xf32>
    %88 = arith.addf %85, %87 : vector<8x32xf32>
    %89 = arith.truncf %88 : vector<8x32xf32> to vector<8x32xbf16>
    %c0_39 = arith.constant 0 : index
    %c0_40 = arith.constant 0 : index
    %90 = vector.load %arg10[%c0_39, %c0_40] : memref<32x64xbf16, #tpu.memory_space<vmem>>, vector<32x64xbf16>
    %cst_41 = arith.constant dense<0.000000e+00> : vector<8x64xf32>
    %91 = tpu.matmul %89, %90, %cst_41 {dimension_numbers = #tpu.dot_dimension_numbers<[1], [0], [0], [1], [0, 0, 1, 1], [], []>} : vector<8x32xbf16>, vector<32x64xbf16>, vector<8x64xf32> -> vector<8x64xf32>
    %c0_42 = arith.constant 0 : index
    %c0_43 = arith.constant 0 : index
    %92 = vector.load %arg11[%c0_42, %c0_43] : memref<1x64xf32, #tpu.memory_space<vmem>>, vector<1x64xf32>
    %93 = vector.broadcast %92 : vector<1x64xf32> to vector<8x64xf32>
    %94 = arith.addf %91, %93 : vector<8x64xf32>
    %cst_44 = arith.constant 0.000000e+00 : f32
    %95 = vector.broadcast %cst_44 : f32 to vector<8x64xf32>
    %96 = arith.maximumf %94, %95 : vector<8x64xf32>
    %97 = arith.truncf %96 : vector<8x64xf32> to vector<8x64xbf16>
    %c0_45 = arith.constant 0 : index
    %c0_46 = arith.constant 0 : index
    %98 = vector.load %arg12[%c0_45, %c0_46] : memref<64x32xbf16, #tpu.memory_space<vmem>>, vector<64x32xbf16>
    %cst_47 = arith.constant dense<0.000000e+00> : vector<8x32xf32>
    %99 = tpu.matmul %97, %98, %cst_47 {dimension_numbers = #tpu.dot_dimension_numbers<[1], [0], [0], [1], [0, 0, 1, 1], [], []>} : vector<8x64xbf16>, vector<64x32xbf16>, vector<8x32xf32> -> vector<8x32xf32>
    %c0_48 = arith.constant 0 : index
    %c0_49 = arith.constant 0 : index
    %100 = vector.load %arg13[%c0_48, %c0_49] : memref<1x32xf32, #tpu.memory_space<vmem>>, vector<1x32xf32>
    %101 = vector.broadcast %100 : vector<1x32xf32> to vector<8x32xf32>
    %102 = arith.addf %99, %101 : vector<8x32xf32>
    %103 = arith.addf %62, %102 : vector<8x32xf32>
    %c0_50 = arith.constant 0 : index
    %c0_51 = arith.constant 0 : index
    %c0_52 = arith.constant 0 : index
    %104 = vector.load %arg14[%c0_50, %c0_51, %c0_52] : memref<1x8x32xf32, #tpu.memory_space<vmem>>, vector<1x8x32xf32>
    %105 = vector.shape_cast %104 : vector<1x8x32xf32> to vector<8x32xf32>
    %106 = vector.shape_cast %103 : vector<8x32xf32> to vector<1x8x32xf32>
    tpu.vector_store %arg14[%c0_50, %c0_51, %c0_52], %106 {strides = array<i32>} : memref<1x8x32xf32, #tpu.memory_space<vmem>>, vector<1x8x32xf32>,
    return
  }
  func.func @transform_0(%arg0: i32) -> (i32, i32, i32) {
    %c0_i32 = arith.constant 0 : i32
    %c0_i32_0 = arith.constant 0 : i32
    %c0_i32_1 = arith.constant 0 : i32
    return %arg0, %c0_i32, %c0_i32_0 : i32, i32, i32
  }
  func.func @transform_1(%arg0: i32) -> (i32, i32) {
    %c0_i32 = arith.constant 0 : i32
    %c0_i32_0 = arith.constant 0 : i32
    %c0_i32_1 = arith.constant 0 : i32
    return %c0_i32, %c0_i32_0 : i32, i32
  }
  func.func @transform_2(%arg0: i32) -> (i32, i32) {
    %c0_i32 = arith.constant 0 : i32
    %c0_i32_0 = arith.constant 0 : i32
    %c0_i32_1 = arith.constant 0 : i32
    return %c0_i32, %c0_i32_0 : i32, i32
  }
  func.func @transform_3(%arg0: i32) -> (i32, i32, i32) {
    %c0_i32 = arith.constant 0 : i32
    %c0_i32_0 = arith.constant 0 : i32
    %c0_i32_1 = arith.constant 0 : i32
    %c0_i32_2 = arith.constant 0 : i32
    return %c0_i32, %c0_i32_0, %c0_i32_1 : i32, i32, i32
  }
  func.func @transform_4(%arg0: i32) -> (i32, i32, i32) {
    %c0_i32 = arith.constant 0 : i32
    %c0_i32_0 = arith.constant 0 : i32
    %c0_i32_1 = arith.constant 0 : i32
    %c0_i32_2 = arith.constant 0 : i32
    return %c0_i32, %c0_i32_0, %c0_i32_1 : i32, i32, i32
  }
  func.func @transform_5(%arg0: i32) -> (i32, i32, i32) {
    %c0_i32 = arith.constant 0 : i32
    %c0_i32_0 = arith.constant 0 : i32
    %c0_i32_1 = arith.constant 0 : i32
    %c0_i32_2 = arith.constant 0 : i32
    return %c0_i32, %c0_i32_0, %c0_i32_1 : i32, i32, i32
  }
  func.func @transform_6(%arg0: i32) -> (i32, i32) {
    %c0_i32 = arith.constant 0 : i32
    %c0_i32_0 = arith.constant 0 : i32
    %c0_i32_1 = arith.constant 0 : i32
    return %c0_i32, %c0_i32_0 : i32, i32
  }
  func.func @transform_7(%arg0: i32) -> (i32, i32) {
    %c0_i32 = arith.constant 0 : i32
    %c0_i32_0 = arith.constant 0 : i32
    %c0_i32_1 = arith.constant 0 : i32
    return %c0_i32, %c0_i32_0 : i32, i32
  }
  func.func @transform_8(%arg0: i32) -> (i32, i32) {
    %c0_i32 = arith.constant 0 : i32
    %c0_i32_0 = arith.constant 0 : i32
    %c0_i32_1 = arith.constant 0 : i32
    return %c0_i32, %c0_i32_0 : i32, i32
  }
  func.func @transform_9(%arg0: i32) -> (i32, i32) {
    %c0_i32 = arith.constant 0 : i32
    %c0_i32_0 = arith.constant 0 : i32
    %c0_i32_1 = arith.constant 0 : i32
    return %c0_i32, %c0_i32_0 : i32, i32
  }
  func.func @transform_10(%arg0: i32) -> (i32, i32) {
    %c0_i32 = arith.constant 0 : i32
    %c0_i32_0 = arith.constant 0 : i32
    %c0_i32_1 = arith.constant 0 : i32
    return %c0_i32, %c0_i32_0 : i32, i32
  }
  func.func @transform_11(%arg0: i32) -> (i32, i32) {
    %c0_i32 = arith.constant 0 : i32
    %c0_i32_0 = arith.constant 0 : i32
    %c0_i32_1 = arith.constant 0 : i32
    return %c0_i32, %c0_i32_0 : i32, i32
  }
  func.func @transform_12(%arg0: i32) -> (i32, i32) {
    %c0_i32 = arith.constant 0 : i32
    %c0_i32_0 = arith.constant 0 : i32
    %c0_i32_1 = arith.constant 0 : i32
    return %c0_i32, %c0_i32_0 : i32, i32
  }
  func.func @transform_13(%arg0: i32) -> (i32, i32, i32) {
    %c0_i32 = arith.constant 0 : i32
    %c0_i32_0 = arith.constant 0 : i32
    %c0_i32_1 = arith.constant 0 : i32
    return %arg0, %c0_i32, %c0_i32_0 : i32, i32, i32
  }
}

</mosaic_0001>

<llo_original>
// kernel: tpu_custom_call.1
$region0: #{tpu_custom_call.1}
  #allocation0 [shape = 'u32[]', space=smem, size = 0x4, offset = 0x4, fixed_abs, tag = 'smem constant byte address 0x4 - core index']
  #allocation1 [shape = 'u32[144,128]{1,0:T(1,128)}', space=vmem, size = 0x12000, scoped, tag = 'internal scratch']
  %s0 = inlined_call_operand.vmem [shape: f32[2,8,32], index: 0, kind: input, shape index: {}]
  %s1 = inlined_call_operand.vmem [shape: f32[1,32], index: 1, kind: input, shape index: {}]
  %s2 = inlined_call_operand.vmem [shape: f32[1,32], index: 2, kind: input, shape index: {}]
  %s3 = inlined_call_operand.vmem [shape: bf16[4,32,24], index: 3, kind: input, shape index: {}]
  %s4 = inlined_call_operand.vmem [shape: f32[4,1,24], index: 4, kind: input, shape index: {}]
  %s5 = inlined_call_operand.vmem [shape: bf16[4,8,32], index: 5, kind: input, shape index: {}]
  %s6 = inlined_call_operand.vmem [shape: f32[1,32], index: 6, kind: input, shape index: {}]
  %s7 = inlined_call_operand.vmem [shape: f32[1,32], index: 7, kind: input, shape index: {}]
  %s8 = inlined_call_operand.vmem [shape: f32[1,32], index: 8, kind: input, shape index: {}]
  %s9 = inlined_call_operand.vmem [shape: bf16[32,64], index: 9, kind: input, shape index: {}]
  %s10 = inlined_call_operand.vmem [shape: f32[1,64], index: 10, kind: input, shape index: {}]
  %s11 = inlined_call_operand.vmem [shape: bf16[64,32], index: 11, kind: input, shape index: {}]
  %s12 = inlined_call_operand.vmem [shape: f32[1,32], index: 12, kind: input, shape index: {}]
  %s13 = inlined_call_operand.hbm [shape: f32[2,8,32], index: 13, kind: output, shape index: {}]
  %s14 = sld [smem:[#allocation0]]
  $region85: #{tpu_custom_call.1} parent=0
    _
  %s16 = ssub.s32 1, %s14
  %s17 = scalar_select 0, %s16, %s14
  $region1: #{tpu_custom_call.1} parent=0
    #allocation2 [shape = 'u8[8192]{0}', space=vmem, size = 0x2000, scoped, tag = 'output window, operand 0']
    #allocation3 [shape = 's32[2]{0}', space=sflag, size = 0x8, scoped, tag = 'scoped memory for tpu_custom_call.1']
    %18 = vsyncpa [#allocation3], 0
    %s19 = scalar_lea.sflag [#allocation3], 1
    %20 = vsyncpa %s19, 0
    loop: start=0, step=1, limit=4
    $region2: #{tpu_custom_call.1} parent=1 // loop_pre_header
      _
    $region3: #{tpu_custom_call.1} parent=1 // loop_header
      %s22 = sphi 0, %s26
      %p23 = scmp.ge.s32.totalorder %s22, 4
      %s32 = sphi 0, %s34
      %s35 = sphi 0, %s32
      %s36 = sphi 0, %s35
      %s52 = sphi 0, %s36
      %s56 = sphi 0, %s56
      %s58 = sphi 0, %s56
      %s59 = sphi 0, %s58
      %s73 = sphi 0, %s59
      %s77 = sphi 0, %s77
      %s79 = sphi 0, %s77
      %s80 = sphi 0, %s79
      %s94 = sphi 0, %s80
      %s98 = sphi 0, %s98
      %s100 = sphi 0, %s98
      %s101 = sphi 0, %s100
      %s115 = sphi 0, %s101
      %s119 = sphi 0, %s119
      %s121 = sphi 0, %s119
      %s122 = sphi 0, %s121
      %s136 = sphi 0, %s122
      %s140 = sphi 0, %s140
      %s142 = sphi 0, %s140
      %s143 = sphi 0, %s142
      %s157 = sphi 0, %s143
      %s161 = sphi 0, %s161
      %s163 = sphi 0, %s161
      %s164 = sphi 0, %s163
      %s178 = sphi 0, %s164
      %s182 = sphi 0, %s182
      %s184 = sphi 0, %s182
      %s185 = sphi 0, %s184
      %s199 = sphi 0, %s185
      %s203 = sphi 0, %s203
      %s205 = sphi 0, %s203
      %s206 = sphi 0, %s205
      %s220 = sphi 0, %s206
      %s224 = sphi 0, %s224
      %s226 = sphi 0, %s224
      %s227 = sphi 0, %s226
      %s241 = sphi 0, %s227
      %s245 = sphi 0, %s245
      %s247 = sphi 0, %s245
      %s248 = sphi 0, %s247
      %s262 = sphi 0, %s248
      %s266 = sphi 0, %s266
      %s268 = sphi 0, %s266
      %s269 = sphi 0, %s268
      %s283 = sphi 0, %s269
      %s287 = sphi 0, %s287
      %s289 = sphi 0, %s287
      %s290 = sphi 0, %s289
      %s304 = sphi 0, %s290
      %s310 = sphi 0, %s312
      %s313 = sphi 0, %s310
      %s314 = sphi 0, %s313
      %s330 = sphi 0, %s314
    $region4: #{tpu_custom_call.1} parent=1 // loop_header_branch
      %25 = sbr.rel (%p23) target = $region8
    $region5: #{tpu_custom_call.1} parent=1 // loop_body
      %s27 = ssub.s32 %s22, 1
      %s28 = ssub.s32 %s22, 2
      %s29 = sadd.s32 %s22, 1
      %s30 = ssub.s32 %s22, %s29
      %p31 = scmp.eq.s32.totalorder %s30, 0
      %s33 = sadd.s32 %s32, 1
      %s34 = scalar_select %p31, %s32, %s33
      %p37 = pneg %p31
      %p38 = scmp.eq.s32.totalorder %s22, 1
      %p39 = por %p37, %p38
      %p40 = scmp.ne.s32.totalorder %s32, %s35
      %p41 = scmp.eq.s32.totalorder %s22, 0
      %p42 = por %p40, %p41
      %p43 = scmp.ne.s32.totalorder %s32, %s35
      %p44 = scmp.eq.s32.totalorder %s27, 1
      %p45 = por %p43, %p44
      %p46 = scmp.ne.s32.totalorder %s35, %s36
      %p47 = scmp.eq.s32.totalorder %s27, 0
      %p48 = por %p46, %p47
      %p49 = scmp.ne.s32.totalorder %s35, %s36
      %p50 = scmp.eq.s32.totalorder %s28, 1
      %p51 = por %p49, %p50
      %p53 = scmp.ne.s32.totalorder %s36, %s52
      %p54 = scmp.eq.s32.totalorder %s28, 0
      %p55 = por %p53, %p54
      %s57 = sadd.s32 %s56, 1
      %p60 = scmp.eq.s32.totalorder %s22, 1
      %p61 = scmp.ne.s32.totalorder %s56, %s58
      %p62 = scmp.eq.s32.totalorder %s22, 0
      %p63 = por %p61, %p62
      %p64 = scmp.ne.s32.totalorder %s56, %s58
      %p65 = scmp.eq.s32.totalorder %s27, 1
      %p66 = por %p64, %p65
      %p67 = scmp.ne.s32.totalorder %s58, %s59
      %p68 = scmp.eq.s32.totalorder %s27, 0
      %p69 = por %p67, %p68
      %p70 = scmp.ne.s32.totalorder %s58, %s59
      %p71 = scmp.eq.s32.totalorder %s28, 1
      %p72 = por %p70, %p71
      %p74 = scmp.ne.s32.totalorder %s59, %s73
      %p75 = scmp.eq.s32.totalorder %s28, 0
      %p76 = por %p74, %p75
      %s78 = sadd.s32 %s77, 1
      %p81 = scmp.eq.s32.totalorder %s22, 1
      %p82 = scmp.ne.s32.totalorder %s77, %s79
      %p83 = scmp.eq.s32.totalorder %s22, 0
      %p84 = por %p82, %p83
      %p85 = scmp.ne.s32.totalorder %s77, %s79
      %p86 = scmp.eq.s32.totalorder %s27, 1
      %p87 = por %p85, %p86
      %p88 = scmp.ne.s32.totalorder %s79, %s80
      %p89 = scmp.eq.s32.totalorder %s27, 0
      %p90 = por %p88, %p89
      %p91 = scmp.ne.s32.totalorder %s79, %s80
      %p92 = scmp.eq.s32.totalorder %s28, 1
      %p93 = por %p91, %p92
      %p95 = scmp.ne.s32.totalorder %s80, %s94
      %p96 = scmp.eq.s32.totalorder %s28, 0
      %p97 = por %p95, %p96
      %s99 = sadd.s32 %s98, 1
      %p102 = scmp.eq.s32.totalorder %s22, 1
      %p103 = scmp.ne.s32.totalorder %s98, %s100
      %p104 = scmp.eq.s32.totalorder %s22, 0
      %p105 = por %p103, %p104
      %p106 = scmp.ne.s32.totalorder %s98, %s100
      %p107 = scmp.eq.s32.totalorder %s27, 1
      %p108 = por %p106, %p107
      %p109 = scmp.ne.s32.totalorder %s100, %s101
      %p110 = scmp.eq.s32.totalorder %s27, 0
      %p111 = por %p109, %p110
      %p112 = scmp.ne.s32.totalorder %s100, %s101
      %p113 = scmp.eq.s32.totalorder %s28, 1
      %p114 = por %p112, %p113
      %p116 = scmp.ne.s32.totalorder %s101, %s115
      %p117 = scmp.eq.s32.totalorder %s28, 0
      %p118 = por %p116, %p117
      %s120 = sadd.s32 %s119, 1
      %p123 = scmp.eq.s32.totalorder %s22, 1
      %p124 = scmp.ne.s32.totalorder %s119, %s121
      %p125 = scmp.eq.s32.totalorder %s22, 0
      %p126 = por %p124, %p125
      %p127 = scmp.ne.s32.totalorder %s119, %s121
      %p128 = scmp.eq.s32.totalorder %s27, 1
      %p129 = por %p127, %p128
      %p130 = scmp.ne.s32.totalorder %s121, %s122
      %p131 = scmp.eq.s32.totalorder %s27, 0
      %p132 = por %p130, %p131
      %p133 = scmp.ne.s32.totalorder %s121, %s122
      %p134 = scmp.eq.s32.totalorder %s28, 1
      %p135 = por %p133, %p134
      %p137 = scmp.ne.s32.totalorder %s122, %s136
      %p138 = scmp.eq.s32.totalorder %s28, 0
      %p139 = por %p137, %p138
      %s141 = sadd.s32 %s140, 1
      %p144 = scmp.eq.s32.totalorder %s22, 1
      %p145 = scmp.ne.s32.totalorder %s140, %s142
      %p146 = scmp.eq.s32.totalorder %s22, 0
      %p147 = por %p145, %p146
      %p148 = scmp.ne.s32.totalorder %s140, %s142
      %p149 = scmp.eq.s32.totalorder %s27, 1
      %p150 = por %p148, %p149
      %p151 = scmp.ne.s32.totalorder %s142, %s143
      %p152 = scmp.eq.s32.totalorder %s27, 0
      %p153 = por %p151, %p152
      %p154 = scmp.ne.s32.totalorder %s142, %s143
      %p155 = scmp.eq.s32.totalorder %s28, 1
      %p156 = por %p154, %p155
      %p158 = scmp.ne.s32.totalorder %s143, %s157
      %p159 = scmp.eq.s32.totalorder %s28, 0
      %p160 = por %p158, %p159
      %s162 = sadd.s32 %s161, 1
      %p165 = scmp.eq.s32.totalorder %s22, 1
      %p166 = scmp.ne.s32.totalorder %s161, %s163
      %p167 = scmp.eq.s32.totalorder %s22, 0
      %p168 = por %p166, %p167
      %p169 = scmp.ne.s32.totalorder %s161, %s163
      %p170 = scmp.eq.s32.totalorder %s27, 1
      %p171 = por %p169, %p170
      %p172 = scmp.ne.s32.totalorder %s163, %s164
      %p173 = scmp.eq.s32.totalorder %s27, 0
      %p174 = por %p172, %p173
      %p175 = scmp.ne.s32.totalorder %s163, %s164
      %p176 = scmp.eq.s32.totalorder %s28, 1
      %p177 = por %p175, %p176
      %p179 = scmp.ne.s32.totalorder %s164, %s178
      %p180 = scmp.eq.s32.totalorder %s28, 0
      %p181 = por %p179, %p180
      %s183 = sadd.s32 %s182, 1
      %p186 = scmp.eq.s32.totalorder %s22, 1
      %p187 = scmp.ne.s32.totalorder %s182, %s184
      %p188 = scmp.eq.s32.totalorder %s22, 0
      %p189 = por %p187, %p188
      %p190 = scmp.ne.s32.totalorder %s182, %s184
      %p191 = scmp.eq.s32.totalorder %s27, 1
      %p192 = por %p190, %p191
      %p193 = scmp.ne.s32.totalorder %s184, %s185
      %p194 = scmp.eq.s32.totalorder %s27, 0
      %p195 = por %p193, %p194
      %p196 = scmp.ne.s32.totalorder %s184, %s185
      %p197 = scmp.eq.s32.totalorder %s28, 1
      %p198 = por %p196, %p197
      %p200 = scmp.ne.s32.totalorder %s185, %s199
      %p201 = scmp.eq.s32.totalorder %s28, 0
      %p202 = por %p200, %p201
      %s204 = sadd.s32 %s203, 1
      %p207 = scmp.eq.s32.totalorder %s22, 1
      %p208 = scmp.ne.s32.totalorder %s203, %s205
      %p209 = scmp.eq.s32.totalorder %s22, 0
      %p210 = por %p208, %p209
      %p211 = scmp.ne.s32.totalorder %s203, %s205
      %p212 = scmp.eq.s32.totalorder %s27, 1
      %p213 = por %p211, %p212
      %p214 = scmp.ne.s32.totalorder %s205, %s206
      %p215 = scmp.eq.s32.totalorder %s27, 0
      %p216 = por %p214, %p215
      %p217 = scmp.ne.s32.totalorder %s205, %s206
      %p218 = scmp.eq.s32.totalorder %s28, 1
      %p219 = por %p217, %p218
      %p221 = scmp.ne.s32.totalorder %s206, %s220
      %p222 = scmp.eq.s32.totalorder %s28, 0
      %p223 = por %p221, %p222
      %s225 = sadd.s32 %s224, 1
      %p228 = scmp.eq.s32.totalorder %s22, 1
      %p229 = scmp.ne.s32.totalorder %s224, %s226
      %p230 = scmp.eq.s32.totalorder %s22, 0
      %p231 = por %p229, %p230
      %p232 = scmp.ne.s32.totalorder %s224, %s226
      %p233 = scmp.eq.s32.totalorder %s27, 1
      %p234 = por %p232, %p233
      %p235 = scmp.ne.s32.totalorder %s226, %s227
      %p236 = scmp.eq.s32.totalorder %s27, 0
      %p237 = por %p235, %p236
      %p238 = scmp.ne.s32.totalorder %s226, %s227
      %p239 = scmp.eq.s32.totalorder %s28, 1
      %p240 = por %p238, %p239
      %p242 = scmp.ne.s32.totalorder %s227, %s241
      %p243 = scmp.eq.s32.totalorder %s28, 0
      %p244 = por %p242, %p243
      %s246 = sadd.s32 %s245, 1
      %p249 = scmp.eq.s32.totalorder %s22, 1
      %p250 = scmp.ne.s32.totalorder %s245, %s247
      %p251 = scmp.eq.s32.totalorder %s22, 0
      %p252 = por %p250, %p251
      %p253 = scmp.ne.s32.totalorder %s245, %s247
      %p254 = scmp.eq.s32.totalorder %s27, 1
      %p255 = por %p253, %p254
      %p256 = scmp.ne.s32.totalorder %s247, %s248
      %p257 = scmp.eq.s32.totalorder %s27, 0
      %p258 = por %p256, %p257
      %p259 = scmp.ne.s32.totalorder %s247, %s248
      %p260 = scmp.eq.s32.totalorder %s28, 1
      %p261 = por %p259, %p260
      %p263 = scmp.ne.s32.totalorder %s248, %s262
      %p264 = scmp.eq.s32.totalorder %s28, 0
      %p265 = por %p263, %p264
      %s267 = sadd.s32 %s266, 1
      %p270 = scmp.eq.s32.totalorder %s22, 1
      %p271 = scmp.ne.s32.totalorder %s266, %s268
      %p272 = scmp.eq.s32.totalorder %s22, 0
      %p273 = por %p271, %p272
      %p274 = scmp.ne.s32.totalorder %s266, %s268
      %p275 = scmp.eq.s32.totalorder %s27, 1
      %p276 = por %p274, %p275
      %p277 = scmp.ne.s32.totalorder %s268, %s269
      %p278 = scmp.eq.s32.totalorder %s27, 0
      %p279 = por %p277, %p278
      %p280 = scmp.ne.s32.totalorder %s268, %s269
      %p281 = scmp.eq.s32.totalorder %s28, 1
      %p282 = por %p280, %p281
      %p284 = scmp.ne.s32.totalorder %s269, %s283
      %p285 = scmp.eq.s32.totalorder %s28, 0
      %p286 = por %p284, %p285
      %s288 = sadd.s32 %s287, 1
      %p291 = scmp.eq.s32.totalorder %s22, 1
      %p292 = scmp.ne.s32.totalorder %s287, %s289
      %p293 = scmp.eq.s32.totalorder %s22, 0
      %p294 = por %p292, %p293
      %p295 = scmp.ne.s32.totalorder %s287, %s289
      %p296 = scmp.eq.s32.totalorder %s27, 1
      %p297 = por %p295, %p296
      %p298 = scmp.ne.s32.totalorder %s289, %s290
      %p299 = scmp.eq.s32.totalorder %s27, 0
      %p300 = por %p298, %p299
      %p301 = scmp.ne.s32.totalorder %s289, %s290
      %p302 = scmp.eq.s32.totalorder %s28, 1
      %p303 = por %p301, %p302
      %p305 = scmp.ne.s32.totalorder %s290, %s304
      %p306 = scmp.eq.s32.totalorder %s28, 0
      %p307 = por %p305, %p306
      %s308 = ssub.s32 %s22, %s29
      %p309 = scmp.eq.s32.totalorder %s308, 0
      %s311 = sadd.s32 %s310, 1
      %s312 = scalar_select %p309, %s310, %s311
      %p315 = pneg %p309
      %p316 = scmp.eq.s32.totalorder %s22, 1
      %p317 = por %p315, %p316
      %p318 = scmp.ne.s32.totalorder %s310, %s313
      %p319 = scmp.eq.s32.totalorder %s22, 0
      %p320 = por %p318, %p319
      %p321 = scmp.ne.s32.totalorder %s310, %s313
      %p322 = scmp.eq.s32.totalorder %s27, 1
      %p323 = por %p321, %p322
      %p324 = scmp.ne.s32.totalorder %s313, %s314
      %p325 = scmp.eq.s32.totalorder %s27, 0
      %p326 = por %p324, %p325
      %p327 = scmp.ne.s32.totalorder %s313, %s314
      %p328 = scmp.eq.s32.totalorder %s28, 1
      %p329 = por %p327, %p328
      %p331 = scmp.ne.s32.totalorder %s314, %s330
      %p332 = scmp.eq.s32.totalorder %s28, 0
      %p333 = por %p331, %p332
      %p334 = scmp.le.s32.totalorder 1, %s22
      %p335 = scmp.lt.s32.totalorder %s22, 3
      %p336 = pnand %p334, %p335
      %p337 = pneg %p336
      // Predicated region
      $region9: #{tpu_custom_call.1} parent=5 // pred_check
        _
      $region10: #{tpu_custom_call.1} parent=5 // pred_check_branch
        %339 = sbr.rel (%p336) target = $region12
      $region11: #{tpu_custom_call.1} parent=5 // pred_region
        %s340 = ssub.s32 %s22, 1
        // Predicated region
        $region13: #{tpu_custom_call.1} parent=11 // pred_check
          %p341 = pneg %p69
        $region14: #{tpu_custom_call.1} parent=11 // pred_check_branch
          %343 = sbr.rel (%p341) target = $region16
        $region15: #{tpu_custom_call.1} parent=11 // pred_region
          _
        $region16: #{tpu_custom_call.1} parent=11 // pred_fallthru
          _
        // Predicated region
        $region17: #{tpu_custom_call.1} parent=11 // pred_check
          %p344 = pneg %p90
        $region18: #{tpu_custom_call.1} parent=11 // pred_check_branch
          %346 = sbr.rel (%p344) target = $region20
        $region19: #{tpu_custom_call.1} parent=11 // pred_region
          _
        $region20: #{tpu_custom_call.1} parent=11 // pred_fallthru
          _
        // Predicated region
        $region21: #{tpu_custom_call.1} parent=11 // pred_check
          %p347 = pneg %p111
        $region22: #{tpu_custom_call.1} parent=11 // pred_check_branch
          %349 = sbr.rel (%p347) target = $region24
        $region23: #{tpu_custom_call.1} parent=11 // pred_region
          _
        $region24: #{tpu_custom_call.1} parent=11 // pred_fallthru
          _
        // Predicated region
        $region25: #{tpu_custom_call.1} parent=11 // pred_check
          %p350 = pneg %p132
        $region26: #{tpu_custom_call.1} parent=11 // pred_check_branch
          %352 = sbr.rel (%p350) target = $region28
        $region27: #{tpu_custom_call.1} parent=11 // pred_region
          _
        $region28: #{tpu_custom_call.1} parent=11 // pred_fallthru
          _
        // Predicated region
        $region29: #{tpu_custom_call.1} parent=11 // pred_check
          %p353 = pneg %p153
        $region30: #{tpu_custom_call.1} parent=11 // pred_check_branch
          %355 = sbr.rel (%p353) target = $region32
        $region31: #{tpu_custom_call.1} parent=11 // pred_region
          _
        $region32: #{tpu_custom_call.1} parent=11 // pred_fallthru
          _
        // Predicated region
        $region33: #{tpu_custom_call.1} parent=11 // pred_check
          %p356 = pneg %p174
        $region34: #{tpu_custom_call.1} parent=11 // pred_check_branch
          %358 = sbr.rel (%p356) target = $region36
        $region35: #{tpu_custom_call.1} parent=11 // pred_region
          _
        $region36: #{tpu_custom_call.1} parent=11 // pred_fallthru
          _
        // Predicated region
        $region37: #{tpu_custom_call.1} parent=11 // pred_check
          %p359 = pneg %p195
        $region38: #{tpu_custom_call.1} parent=11 // pred_check_branch
          %361 = sbr.rel (%p359) target = $region40
        $region39: #{tpu_custom_call.1} parent=11 // pred_region
          _
        $region40: #{tpu_custom_call.1} parent=11 // pred_fallthru
          _
        // Predicated region
        $region41: #{tpu_custom_call.1} parent=11 // pred_check
          %p362 = pneg %p216
        $region42: #{tpu_custom_call.1} parent=11 // pred_check_branch
          %364 = sbr.rel (%p362) target = $region44
        $region43: #{tpu_custom_call.1} parent=11 // pred_region
          _
        $region44: #{tpu_custom_call.1} parent=11 // pred_fallthru
          _
        // Predicated region
        $region45: #{tpu_custom_call.1} parent=11 // pred_check
          %p365 = pneg %p237
        $region46: #{tpu_custom_call.1} parent=11 // pred_check_branch
          %367 = sbr.rel (%p365) target = $region48
        $region47: #{tpu_custom_call.1} parent=11 // pred_region
          _
        $region48: #{tpu_custom_call.1} parent=11 // pred_fallthru
          _
        // Predicated region
        $region49: #{tpu_custom_call.1} parent=11 // pred_check
          %p368 = pneg %p258
        $region50: #{tpu_custom_call.1} parent=11 // pred_check_branch
          %370 = sbr.rel (%p368) target = $region52
        $region51: #{tpu_custom_call.1} parent=11 // pred_region
          _
        $region52: #{tpu_custom_call.1} parent=11 // pred_fallthru
          _
        // Predicated region
        $region53: #{tpu_custom_call.1} parent=11 // pred_check
          %p371 = pneg %p279
        $region54: #{tpu_custom_call.1} parent=11 // pred_check_branch
          %373 = sbr.rel (%p371) target = $region56
        $region55: #{tpu_custom_call.1} parent=11 // pred_region
          _
        $region56: #{tpu_custom_call.1} parent=11 // pred_fallthru
          _
        // Predicated region
        $region57: #{tpu_custom_call.1} parent=11 // pred_check
          %p374 = pneg %p300
        $region58: #{tpu_custom_call.1} parent=11 // pred_check_branch
          %376 = sbr.rel (%p374) target = $region60
        $region59: #{tpu_custom_call.1} parent=11 // pred_region
          _
        $region60: #{tpu_custom_call.1} parent=11 // pred_fallthru
          _
      $region12: #{tpu_custom_call.1} parent=5 // pred_fallthru
        _
      %p377 = scmp.lt.s32.totalorder %s22, 2
      // Predicated region
      $region61: #{tpu_custom_call.1} parent=5 // pred_check
        %p378 = pneg %p377
      $region62: #{tpu_custom_call.1} parent=5 // pred_check_branch
        %380 = sbr.rel (%p378) target = $region64
      $region63: #{tpu_custom_call.1} parent=5 // pred_region
        // Predicated region
        $region65: #{tpu_custom_call.1} parent=63 // pred_check
          %p381 = pneg %p42
        $region66: #{tpu_custom_call.1} parent=63 // pred_check_branch
          %383 = sbr.rel (%p381) target = $region68
        $region67: #{tpu_custom_call.1} parent=63 // pred_region
          %p384 = scmp.lt.s32.totalorder %s22, 1
          %s385 = scalar_select %p384, %s22, 1
          %s386 = smul.addr %s385, 8
          %s387 = scalar_lea.vmem %s0, %s386
        $region68: #{tpu_custom_call.1} parent=63 // pred_fallthru
          _
      $region64: #{tpu_custom_call.1} parent=5 // pred_fallthru
        _
      %p388 = scmp.le.s32.totalorder 1, %s22
      %p389 = scmp.lt.s32.totalorder %s22, 3
      %p390 = pnand %p388, %p389
      %p391 = pneg %p390
      // Predicated region
      $region69: #{tpu_custom_call.1} parent=5 // pred_check
        _
      $region70: #{tpu_custom_call.1} parent=5 // pred_check_branch
        %393 = sbr.rel (%p390) target = $region72
      $region71: #{tpu_custom_call.1} parent=5 // pred_region
        %s394 = ssub.s32 %s22, 1
        %p395 = scmp.lt.s32.totalorder %s27, 1
        %s396 = scalar_select %p395, %s27, 1
        %s397 = smul.addr %s396, 8
        %s398 = scalar_lea.vmem %s0, %s397
        %p399 = pneg %p48
        %p400 = pneg %p45
        %p401 = pneg %p69
        %p402 = pneg %p66
        %p403 = pneg %p90
        %p404 = pneg %p87
        %p405 = pneg %p111
        %p406 = pneg %p108
        %p407 = pneg %p132
        %p408 = pneg %p129
        %p409 = pneg %p153
        %p410 = pneg %p150
        %p411 = pneg %p174
        %p412 = pneg %p171
        %p413 = pneg %p195
        %p414 = pneg %p192
        %p415 = pneg %p216
        %p416 = pneg %p213
        %p417 = pneg %p237
        %p418 = pneg %p234
        %p419 = pneg %p258
        %p420 = pneg %p255
        %p421 = pneg %p279
        %p422 = pneg %p276
        %p423 = pneg %p300
        %p424 = pneg %p297
        %p425 = pneg %p326
        %p426 = pneg %p323
        %s427 = sand.u32 %s313, 1
        %s428 = scalar_lea.sflag [#allocation3], %s427
        %s429 = sand.u32 %s313, 1
        %s430 = smul.addr %s429, 8
        %s431 = scalar_lea.vmem [#allocation2], %s430
        %p432 = scmp.lt.s32.totalorder %s27, 1
        %s433 = scalar_select %p432, %s27, 1
        %s434 = smul.addr %s433, 8
        %s435 = scalar_lea.vmem %s0, %s434
        %v437 = vld [vmem:[%s435] sm:$0xff]
        %vm438 = vcmask 261120
        %v439 = vsel %vm438, %v437, 0.0
        %440 = vadd.xlane.f32.xlu0 %v439
        %v441 = vpop.xlane.xlu0 %440
        %v442 = vrcp.pop 32.0
        %v443 = vmul.f32 %v441, %v442
        %v444 = vmul.f32 %v437, %v437
        %v445 = vsel %vm438, %v444, 0.0
        %446 = vadd.xlane.f32.xlu0 %v445
        %v447 = vpop.xlane.xlu0 %446
        %v448 = vmul.f32 %v447, %v442
        %v449 = vmul.f32 %v443, %v443
        %v450 = vsub.f32 %v448, %v449
        %v451 = vmax.f32 %v450, 0.0
        %v452 = vsub.f32 %v437, %v443
        %v453 = vadd.f32 %v451, 1e-05
        %v454 = vrsqrt.pop %v453
        %v455 = vmul.f32 %v452, %v454
        %v456 = vld [vmem:[%s1] sm:$0x1]
        %v458 = vlaneseq
        %v459 = vshrl.u32 %v458, 7
        %v460 = vsub.s32 0, %v459
        %v461 = vrot.slane %v456, %v460
        %v463 = vmul.f32 %v455, %v461
        %v464 = vld [vmem:[%s2] sm:$0x1]
        %v466 = vlaneseq
        %v467 = vshrl.u32 %v466, 7
        %v468 = vsub.s32 0, %v467
        %v469 = vrot.slane %v464, %v468
        %v471 = vadd.f32 %v463, %v469
        %v472 = vpack.c.bf16 %v471, %v471
        %v473 = vld [vmem:[%s3] sm:$0xf]
        %v474 = vld [vmem:[%s3 + $0x4] sm:$0xf]
        %v475 = vld [vmem:[%s3 + $0x8] sm:$0xf]
        %v476 = vld [vmem:[%s3 + $0xc] sm:$0xf]
        %v477 = vld [vmem:[%s3 + $0x10] sm:$0xf]
        %v478 = vld [vmem:[%s3 + $0x14] sm:$0xf]
        %v479 = vld [vmem:[%s3 + $0x18] sm:$0xf]
        %v480 = vld [vmem:[%s3 + $0x1c] sm:$0xf]
        %v481 = vld [vmem:[%s3 + $0x20] sm:$0xf]
        %v482 = vld [vmem:[%s3 + $0x24] sm:$0xf]
        %v483 = vld [vmem:[%s3 + $0x28] sm:$0xf]
        %v484 = vld [vmem:[%s3 + $0x2c] sm:$0xf]
        %v485 = vld [vmem:[%s3 + $0x30] sm:$0xf]
        %v486 = vld [vmem:[%s3 + $0x34] sm:$0xf]
        %v487 = vld [vmem:[%s3 + $0x38] sm:$0xf]
        %v488 = vld [vmem:[%s3 + $0x3c] sm:$0xf]
        %v489 = vld [vmem:[%s4] sm:$0x1]
        %v490 = vld [vmem:[%s4 + $0x1] sm:$0x1]
        %v491 = vld [vmem:[%s4 + $0x2] sm:$0x1]
        %v492 = vld [vmem:[%s4 + $0x3] sm:$0x1]
        %v497 = vlaneseq
        %v498 = vshrl.u32 %v497, 7
        %v499 = vsub.s32 0, %v498
        %v500 = vrot.slane %v489, %v499
        %v501 = vlaneseq
        %v502 = vshrl.u32 %v501, 7
        %v503 = vsub.s32 0, %v502
        %v504 = vrot.slane %v490, %v503
        %v505 = vlaneseq
        %v506 = vshrl.u32 %v505, 7
        %v507 = vsub.s32 0, %v506
        %v508 = vrot.slane %v491, %v507
        %v509 = vlaneseq
        %v510 = vshrl.u32 %v509, 7
        %v511 = vsub.s32 0, %v510
        %v512 = vrot.slane %v492, %v511
        %v521 = vunpack.c.l.b16 %v473
        %v522 = vunpack.c.l.b16 %v474
        %v523 = vunpack.c.l.b16 %v475
        %v524 = vunpack.c.l.b16 %v476
        %v525 = vpack.c.b16 %v522, %v521
        %v526 = vpack.c.b16 %v524, %v523
        %v530 = vsel %vm438, %v472, 0
        %532 = vmatprep.subr.bf16.mxu0 0
        %533 = vmatpush1.bf16.msra.mxu0 %v525
        %534 = vmatprep.subr.bf16.mxu0 0
        %535 = vmatpush1.bf16.msra.mxu0 %v526
        %536 = vmatprep.subr.bf16.mxu0 0
        %537 = vmatpush1.bf16.msra.mxu0 0
        %538 = vmatprep.subr.bf16.mxu0 0
        %539 = vmatpush1.bf16.msra.mxu0 0
        %540 = vmatprep.subr.bf16.mxu0 0
        %541 = vmatpush1.bf16.msra.mxu0 0
        %542 = vmatprep.subr.bf16.mxu0 0
        %543 = vmatpush1.bf16.msra.mxu0 0
        %544 = vmatprep.subr.bf16.mxu0 0
        %545 = vmatpush1.bf16.msra.mxu0 0
        %546 = vmatprep.subr.bf16.mxu0 0
        %547 = vmatpush1.bf16.msra.mxu0 0
        %548 = vmatprep.subr.bf16.mxu0 0
        %549 = vmatpush1.bf16.msra.mxu0 0
        %550 = vmatprep.subr.bf16.mxu0 0
        %551 = vmatpush1.bf16.msra.mxu0 0
        %552 = vmatprep.subr.bf16.mxu0 0
        %553 = vmatpush1.bf16.msra.mxu0 0
        %554 = vmatprep.subr.bf16.mxu0 0
        %555 = vmatpush1.bf16.msra.mxu0 0
        %556 = vmatprep.subr.bf16.mxu0 0
        %557 = vmatpush1.bf16.msra.mxu0 0
        %558 = vmatprep.subr.bf16.mxu0 0
        %559 = vmatpush1.bf16.msra.mxu0 0
        %560 = vmatprep.subr.bf16.mxu0 0
        %561 = vmatpush1.bf16.msra.mxu0 0
        %562 = vmatprep.subr.bf16.mxu0 0
        %563 = vmatpush1.bf16.msra.mxu0 0
        %564 = vmatprep.mubr.bf16.mxu0 0
        %565 = vmatmul.mubr.bf16.gmra.mrb[0].mxu0 %v530
        %v566 = vpop.f32.mrb[0].mxu0
        %v567 = vadd.f32 %v500, %v566
        %v568 = vpop.f32.mrb[0].mxu0
        %v569 = vpop.f32.mrb[0].mxu0
        %v570 = vpop.f32.mrb[0].mxu0
        %571 = vdwg.mxu0
        %v576 = vunpack.c.l.b16 %v477
        %v577 = vunpack.c.l.b16 %v478
        %v578 = vunpack.c.l.b16 %v479
        %v579 = vunpack.c.l.b16 %v480
        %v580 = vpack.c.b16 %v577, %v576
        %v581 = vpack.c.b16 %v579, %v578
        %584 = vmatprep.subr.bf16.mxu0 0
        %585 = vmatpush1.bf16.msra.mxu0 %v580
        %586 = vmatprep.subr.bf16.mxu0 0
        %587 = vmatpush1.bf16.msra.mxu0 %v581
        %588 = vmatprep.subr.bf16.mxu0 0
        %589 = vmatpush1.bf16.msra.mxu0 0
        %590 = vmatprep.subr.bf16.mxu0 0
        %591 = vmatpush1.bf16.msra.mxu0 0
        %592 = vmatprep.subr.bf16.mxu0 0
        %593 = vmatpush1.bf16.msra.mxu0 0
        %594 = vmatprep.subr.bf16.mxu0 0
        %595 = vmatpush1.bf16.msra.mxu0 0
        %596 = vmatprep.subr.bf16.mxu0 0
        %597 = vmatpush1.bf16.msra.mxu0 0
        %598 = vmatprep.subr.bf16.mxu0 0
        %599 = vmatpush1.bf16.msra.mxu0 0
        %600 = vmatprep.subr.bf16.mxu0 0
        %601 = vmatpush1.bf16.msra.mxu0 0
        %602 = vmatprep.subr.bf16.mxu0 0
        %603 = vmatpush1.bf16.msra.mxu0 0
        %604 = vmatprep.subr.bf16.mxu0 0
        %605 = vmatpush1.bf16.msra.mxu0 0
        %606 = vmatprep.subr.bf16.mxu0 0
        %607 = vmatpush1.bf16.msra.mxu0 0
        %608 = vmatprep.subr.bf16.mxu0 0
        %609 = vmatpush1.bf16.msra.mxu0 0
        %610 = vmatprep.subr.bf16.mxu0 0
        %611 = vmatpush1.bf16.msra.mxu0 0
        %612 = vmatprep.subr.bf16.mxu0 0
        %613 = vmatpush1.bf16.msra.mxu0 0
        %614 = vmatprep.subr.bf16.mxu0 0
        %615 = vmatpush1.bf16.msra.mxu0 0
        %616 = vmatprep.mubr.bf16.mxu0 0
        %617 = vmatmul.mubr.bf16.gmra.mrb[0].mxu0 %v530
        %v618 = vpop.f32.mrb[0].mxu0
        %v619 = vadd.f32 %v504, %v618
        %v620 = vpop.f32.mrb[0].mxu0
        %v621 = vpop.f32.mrb[0].mxu0
        %v622 = vpop.f32.mrb[0].mxu0
        %623 = vdwg.mxu0
        %v628 = vunpack.c.l.b16 %v481
        %v629 = vunpack.c.l.b16 %v482
        %v630 = vunpack.c.l.b16 %v483
        %v631 = vunpack.c.l.b16 %v484
        %v632 = vpack.c.b16 %v629, %v628
        %v633 = vpack.c.b16 %v631, %v630
        %636 = vmatprep.subr.bf16.mxu0 0
        %637 = vmatpush1.bf16.msra.mxu0 %v632
        %638 = vmatprep.subr.bf16.mxu0 0
        %639 = vmatpush1.bf16.msra.mxu0 %v633
        %640 = vmatprep.subr.bf16.mxu0 0
        %641 = vmatpush1.bf16.msra.mxu0 0
        %642 = vmatprep.subr.bf16.mxu0 0
        %643 = vmatpush1.bf16.msra.mxu0 0
        %644 = vmatprep.subr.bf16.mxu0 0
        %645 = vmatpush1.bf16.msra.mxu0 0
        %646 = vmatprep.subr.bf16.mxu0 0
        %647 = vmatpush1.bf16.msra.mxu0 0
        %648 = vmatprep.subr.bf16.mxu0 0
        %649 = vmatpush1.bf16.msra.mxu0 0
        %650 = vmatprep.subr.bf16.mxu0 0
        %651 = vmatpush1.bf16.msra.mxu0 0
        %652 = vmatprep.subr.bf16.mxu0 0
        %653 = vmatpush1.bf16.msra.mxu0 0
        %654 = vmatprep.subr.bf16.mxu0 0
        %655 = vmatpush1.bf16.msra.mxu0 0
        %656 = vmatprep.subr.bf16.mxu0 0
        %657 = vmatpush1.bf16.msra.mxu0 0
        %658 = vmatprep.subr.bf16.mxu0 0
        %659 = vmatpush1.bf16.msra.mxu0 0
        %660 = vmatprep.subr.bf16.mxu0 0
        %661 = vmatpush1.bf16.msra.mxu0 0
        %662 = vmatprep.subr.bf16.mxu0 0
        %663 = vmatpush1.bf16.msra.mxu0 0
        %664 = vmatprep.subr.bf16.mxu0 0
        %665 = vmatpush1.bf16.msra.mxu0 0
        %666 = vmatprep.subr.bf16.mxu0 0
        %667 = vmatpush1.bf16.msra.mxu0 0
        %668 = vmatprep.mubr.bf16.mxu0 0
        %669 = vmatmul.mubr.bf16.gmra.mrb[0].mxu0 %v530
        %v670 = vpop.f32.mrb[0].mxu0
        %v671 = vadd.f32 %v508, %v670
        %v672 = vpop.f32.mrb[0].mxu0
        %v673 = vpop.f32.mrb[0].mxu0
        %v674 = vpop.f32.mrb[0].mxu0
        %675 = vdwg.mxu0
        %v680 = vunpack.c.l.b16 %v485
        %v681 = vunpack.c.l.b16 %v486
        %v682 = vunpack.c.l.b16 %v487
        %v683 = vunpack.c.l.b16 %v488
        %v684 = vpack.c.b16 %v681, %v680
        %v685 = vpack.c.b16 %v683, %v682
        %688 = vmatprep.subr.bf16.mxu0 0
        %689 = vmatpush1.bf16.msra.mxu0 %v684
        %690 = vmatprep.subr.bf16.mxu0 0
        %691 = vmatpush1.bf16.msra.mxu0 %v685
        %692 = vmatprep.subr.bf16.mxu0 0
        %693 = vmatpush1.bf16.msra.mxu0 0
        %694 = vmatprep.subr.bf16.mxu0 0
        %695 = vmatpush1.bf16.msra.mxu0 0
        %696 = vmatprep.subr.bf16.mxu0 0
        %697 = vmatpush1.bf16.msra.mxu0 0
        %698 = vmatprep.subr.bf16.mxu0 0
        %699 = vmatpush1.bf16.msra.mxu0 0
        %700 = vmatprep.subr.bf16.mxu0 0
        %701 = vmatpush1.bf16.msra.mxu0 0
        %702 = vmatprep.subr.bf16.mxu0 0
        %703 = vmatpush1.bf16.msra.mxu0 0
        %704 = vmatprep.subr.bf16.mxu0 0
        %705 = vmatpush1.bf16.msra.mxu0 0
        %706 = vmatprep.subr.bf16.mxu0 0
        %707 = vmatpush1.bf16.msra.mxu0 0
        %708 = vmatprep.subr.bf16.mxu0 0
        %709 = vmatpush1.bf16.msra.mxu0 0
        %710 = vmatprep.subr.bf16.mxu0 0
        %711 = vmatpush1.bf16.msra.mxu0 0
        %712 = vmatprep.subr.bf16.mxu0 0
        %713 = vmatpush1.bf16.msra.mxu0 0
        %714 = vmatprep.subr.bf16.mxu0 0
        %715 = vmatpush1.bf16.msra.mxu0 0
        %716 = vmatprep.subr.bf16.mxu0 0
        %717 = vmatpush1.bf16.msra.mxu0 0
        %718 = vmatprep.subr.bf16.mxu0 0
        %719 = vmatpush1.bf16.msra.mxu0 0
        %720 = vmatprep.mubr.bf16.mxu0 0
        %721 = vmatmul.mubr.bf16.gmra.mrb[0].mxu0 %v530
        %v722 = vpop.f32.mrb[0].mxu0
        %v723 = vadd.f32 %v512, %v722
        %v724 = vpop.f32.mrb[0].mxu0
        %v725 = vpop.f32.mrb[0].mxu0
        %v726 = vpop.f32.mrb[0].mxu0
        %727 = vdwg.mxu0
        %v728 = vpack.c.bf16 %v567, %v567
        %v729 = vpack.c.bf16 %v619, %v619
        %v730 = vpack.c.bf16 %v671, %v671
        %v731 = vpack.c.bf16 %v723, %v723
        %v732 = vld [vmem:[%s5] sm:$0xf]
        %v733 = vld [vmem:[%s5 + $0x4] sm:$0xf]
        %v734 = vld [vmem:[%s5 + $0x8] sm:$0xf]
        %v735 = vld [vmem:[%s5 + $0xc] sm:$0xf]
        %737 = vrot.lane.b32.xlu0 %v728, 120
        %v738 = vpop.permute.xlu0 %737
        %vm739 = vcmask 64512
        %v741 = vsel %vm739, %v728, 0
        %v744 = vsel %vm739, %v738, 0
        %746 = vmatprep.subr.bf16.mxu0 0
        %747 = vmatpush1.bf16.xpose.msra.mxu0 %v744
        %748 = vmatprep.subr.bf16.mxu0 0
        %749 = vmatpush1.bf16.xpose.msra.mxu0 0
        %750 = vmatprep.subr.bf16.mxu0 0
        %751 = vmatpush1.bf16.xpose.msra.mxu0 0
        %752 = vmatprep.subr.bf16.mxu0 0
        %753 = vmatpush1.bf16.xpose.msra.mxu0 0
        %754 = vmatprep.subr.bf16.mxu0 0
        %755 = vmatpush1.bf16.xpose.msra.mxu0 0
        %756 = vmatprep.subr.bf16.mxu0 0
        %757 = vmatpush1.bf16.xpose.msra.mxu0 0
        %758 = vmatprep.subr.bf16.mxu0 0
        %759 = vmatpush1.bf16.xpose.msra.mxu0 0
        %760 = vmatprep.subr.bf16.mxu0 0
        %761 = vmatpush1.bf16.xpose.msra.mxu0 0
        %762 = vmatprep.subr.bf16.mxu0 0
        %763 = vmatpush1.bf16.xpose.msra.mxu0 0
        %764 = vmatprep.subr.bf16.mxu0 0
        %765 = vmatpush1.bf16.xpose.msra.mxu0 0
        %766 = vmatprep.subr.bf16.mxu0 0
        %767 = vmatpush1.bf16.xpose.msra.mxu0 0
        %768 = vmatprep.subr.bf16.mxu0 0
        %769 = vmatpush1.bf16.xpose.msra.mxu0 0
        %770 = vmatprep.subr.bf16.mxu0 0
        %771 = vmatpush1.bf16.xpose.msra.mxu0 0
        %772 = vmatprep.subr.bf16.mxu0 0
        %773 = vmatpush1.bf16.xpose.msra.mxu0 0
        %774 = vmatprep.subr.bf16.mxu0 0
        %775 = vmatpush1.bf16.xpose.msra.mxu0 0
        %776 = vmatprep.subr.bf16.mxu0 0
        %777 = vmatpush1.bf16.xpose.msra.mxu0 0
        %778 = vmatprep.mubr.bf16.mxu0 0
        %779 = vmatmul.mubr.bf16.gmra.mrb[0].mxu0 %v741
        %v780 = vpop.f32.mrb[0].mxu0
        %v781 = vadd.f32 0.0, %v780
        %v782 = vpop.f32.mrb[0].mxu0
        %v783 = vpop.f32.mrb[0].mxu0
        %v784 = vpop.f32.mrb[0].mxu0
        %785 = vdwg.mxu0
        %787 = vrot.lane.b32.xlu0 %v729, 120
        %v788 = vpop.permute.xlu0 %787
        %v790 = vsel %vm739, %v729, 0
        %v793 = vsel %vm739, %v788, 0
        %795 = vmatprep.subr.bf16.mxu0 0
        %796 = vmatpush1.bf16.xpose.msra.mxu0 %v793
        %797 = vmatprep.subr.bf16.mxu0 0
        %798 = vmatpush1.bf16.xpose.msra.mxu0 0
        %799 = vmatprep.subr.bf16.mxu0 0
        %800 = vmatpush1.bf16.xpose.msra.mxu0 0
        %801 = vmatprep.subr.bf16.mxu0 0
        %802 = vmatpush1.bf16.xpose.msra.mxu0 0
        %803 = vmatprep.subr.bf16.mxu0 0
        %804 = vmatpush1.bf16.xpose.msra.mxu0 0
        %805 = vmatprep.subr.bf16.mxu0 0
        %806 = vmatpush1.bf16.xpose.msra.mxu0 0
        %807 = vmatprep.subr.bf16.mxu0 0
        %808 = vmatpush1.bf16.xpose.msra.mxu0 0
        %809 = vmatprep.subr.bf16.mxu0 0
        %810 = vmatpush1.bf16.xpose.msra.mxu0 0
        %811 = vmatprep.subr.bf16.mxu0 0
        %812 = vmatpush1.bf16.xpose.msra.mxu0 0
        %813 = vmatprep.subr.bf16.mxu0 0
        %814 = vmatpush1.bf16.xpose.msra.mxu0 0
        %815 = vmatprep.subr.bf16.mxu0 0
        %816 = vmatpush1.bf16.xpose.msra.mxu0 0
        %817 = vmatprep.subr.bf16.mxu0 0
        %818 = vmatpush1.bf16.xpose.msra.mxu0 0
        %819 = vmatprep.subr.bf16.mxu0 0
        %820 = vmatpush1.bf16.xpose.msra.mxu0 0
        %821 = vmatprep.subr.bf16.mxu0 0
        %822 = vmatpush1.bf16.xpose.msra.mxu0 0
        %823 = vmatprep.subr.bf16.mxu0 0
        %824 = vmatpush1.bf16.xpose.msra.mxu0 0
        %825 = vmatprep.subr.bf16.mxu0 0
        %826 = vmatpush1.bf16.xpose.msra.mxu0 0
        %827 = vmatprep.mubr.bf16.mxu0 0
        %828 = vmatmul.mubr.bf16.gmra.mrb[0].mxu0 %v790
        %v829 = vpop.f32.mrb[0].mxu0
        %v830 = vadd.f32 0.0, %v829
        %v831 = vpop.f32.mrb[0].mxu0
        %v832 = vpop.f32.mrb[0].mxu0
        %v833 = vpop.f32.mrb[0].mxu0
        %834 = vdwg.mxu0
        %836 = vrot.lane.b32.xlu0 %v730, 120
        %v837 = vpop.permute.xlu0 %836
        %v839 = vsel %vm739, %v730, 0
        %v842 = vsel %vm739, %v837, 0
        %844 = vmatprep.subr.bf16.mxu0 0
        %845 = vmatpush1.bf16.xpose.msra.mxu0 %v842
        %846 = vmatprep.subr.bf16.mxu0 0
        %847 = vmatpush1.bf16.xpose.msra.mxu0 0
        %848 = vmatprep.subr.bf16.mxu0 0
        %849 = vmatpush1.bf16.xpose.msra.mxu0 0
        %850 = vmatprep.subr.bf16.mxu0 0
        %851 = vmatpush1.bf16.xpose.msra.mxu0 0
        %852 = vmatprep.subr.bf16.mxu0 0
        %853 = vmatpush1.bf16.xpose.msra.mxu0 0
        %854 = vmatprep.subr.bf16.mxu0 0
        %855 = vmatpush1.bf16.xpose.msra.mxu0 0
        %856 = vmatprep.subr.bf16.mxu0 0
        %857 = vmatpush1.bf16.xpose.msra.mxu0 0
        %858 = vmatprep.subr.bf16.mxu0 0
        %859 = vmatpush1.bf16.xpose.msra.mxu0 0
        %860 = vmatprep.subr.bf16.mxu0 0
        %861 = vmatpush1.bf16.xpose.msra.mxu0 0
        %862 = vmatprep.subr.bf16.mxu0 0
        %863 = vmatpush1.bf16.xpose.msra.mxu0 0
        %864 = vmatprep.subr.bf16.mxu0 0
        %865 = vmatpush1.bf16.xpose.msra.mxu0 0
        %866 = vmatprep.subr.bf16.mxu0 0
        %867 = vmatpush1.bf16.xpose.msra.mxu0 0
        %868 = vmatprep.subr.bf16.mxu0 0
        %869 = vmatpush1.bf16.xpose.msra.mxu0 0
        %870 = vmatprep.subr.bf16.mxu0 0
        %871 = vmatpush1.bf16.xpose.msra.mxu0 0
        %872 = vmatprep.subr.bf16.mxu0 0
        %873 = vmatpush1.bf16.xpose.msra.mxu0 0
        %874 = vmatprep.subr.bf16.mxu0 0
        %875 = vmatpush1.bf16.xpose.msra.mxu0 0
        %876 = vmatprep.mubr.bf16.mxu0 0
        %877 = vmatmul.mubr.bf16.gmra.mrb[0].mxu0 %v839
        %v878 = vpop.f32.mrb[0].mxu0
        %v879 = vadd.f32 0.0, %v878
        %v880 = vpop.f32.mrb[0].mxu0
        %v881 = vpop.f32.mrb[0].mxu0
        %v882 = vpop.f32.mrb[0].mxu0
        %883 = vdwg.mxu0
        %885 = vrot.lane.b32.xlu0 %v731, 120
        %v886 = vpop.permute.xlu0 %885
        %v888 = vsel %vm739, %v731, 0
        %v891 = vsel %vm739, %v886, 0
        %893 = vmatprep.subr.bf16.mxu0 0
        %894 = vmatpush1.bf16.xpose.msra.mxu0 %v891
        %895 = vmatprep.subr.bf16.mxu0 0
        %896 = vmatpush1.bf16.xpose.msra.mxu0 0
        %897 = vmatprep.subr.bf16.mxu0 0
        %898 = vmatpush1.bf16.xpose.msra.mxu0 0
        %899 = vmatprep.subr.bf16.mxu0 0
        %900 = vmatpush1.bf16.xpose.msra.mxu0 0
        %901 = vmatprep.subr.bf16.mxu0 0
        %902 = vmatpush1.bf16.xpose.msra.mxu0 0
        %903 = vmatprep.subr.bf16.mxu0 0
        %904 = vmatpush1.bf16.xpose.msra.mxu0 0
        %905 = vmatprep.subr.bf16.mxu0 0
        %906 = vmatpush1.bf16.xpose.msra.mxu0 0
        %907 = vmatprep.subr.bf16.mxu0 0
        %908 = vmatpush1.bf16.xpose.msra.mxu0 0
        %909 = vmatprep.subr.bf16.mxu0 0
        %910 = vmatpush1.bf16.xpose.msra.mxu0 0
        %911 = vmatprep.subr.bf16.mxu0 0
        %912 = vmatpush1.bf16.xpose.msra.mxu0 0
        %913 = vmatprep.subr.bf16.mxu0 0
        %914 = vmatpush1.bf16.xpose.msra.mxu0 0
        %915 = vmatprep.subr.bf16.mxu0 0
        %916 = vmatpush1.bf16.xpose.msra.mxu0 0
        %917 = vmatprep.subr.bf16.mxu0 0
        %918 = vmatpush1.bf16.xpose.msra.mxu0 0
        %919 = vmatprep.subr.bf16.mxu0 0
        %920 = vmatpush1.bf16.xpose.msra.mxu0 0
        %921 = vmatprep.subr.bf16.mxu0 0
        %922 = vmatpush1.bf16.xpose.msra.mxu0 0
        %923 = vmatprep.subr.bf16.mxu0 0
        %924 = vmatpush1.bf16.xpose.msra.mxu0 0
        %925 = vmatprep.mubr.bf16.mxu0 0
        %926 = vmatmul.mubr.bf16.gmra.mrb[0].mxu0 %v888
        %v927 = vpop.f32.mrb[0].mxu0
        %v928 = vadd.f32 0.0, %v927
        %v929 = vpop.f32.mrb[0].mxu0
        %v930 = vpop.f32.mrb[0].mxu0
        %v931 = vpop.f32.mrb[0].mxu0
        %932 = vdwg.mxu0
        %v933 = vsel %vm739, %v781, -inf
        %934 = vmax.xlane.f32.xlu0 %v933
        %v935 = vpop.xlane.xlu0 %934
        %v936 = vsel %vm739, %v830, -inf
        %937 = vmax.xlane.f32.xlu0 %v936
        %v938 = vpop.xlane.xlu0 %937
        %v939 = vsel %vm739, %v879, -inf
        %940 = vmax.xlane.f32.xlu0 %v939
        %v941 = vpop.xlane.xlu0 %940
        %v942 = vsel %vm739, %v928, -inf
        %943 = vmax.xlane.f32.xlu0 %v942
        %v944 = vpop.xlane.xlu0 %943
        %v945 = vsub.f32 %v781, %v935
        %v946 = vsub.f32 %v830, %v938
        %v947 = vsub.f32 %v879, %v941
        %v948 = vsub.f32 %v928, %v944
        %v949 = vmul.f32 %v945, 1.442695
        %v950 = vpow.pop %v949
        %v951 = vmul.f32 %v946, 1.442695
        %v952 = vpow.pop %v951
        %v953 = vmul.f32 %v947, 1.442695
        %v954 = vpow.pop %v953
        %v955 = vmul.f32 %v948, 1.442695
        %v956 = vpow.pop %v955
        %v957 = vsel %vm739, %v950, 0.0
        %958 = vadd.xlane.f32.xlu0 %v957
        %v959 = vpop.xlane.xlu0 %958
        %v960 = vsel %vm739, %v952, 0.0
        %961 = vadd.xlane.f32.xlu0 %v960
        %v962 = vpop.xlane.xlu0 %961
        %v963 = vsel %vm739, %v954, 0.0
        %964 = vadd.xlane.f32.xlu0 %v963
        %v965 = vpop.xlane.xlu0 %964
        %v966 = vsel %vm739, %v956, 0.0
        %967 = vadd.xlane.f32.xlu0 %v966
        %v968 = vpop.xlane.xlu0 %967
        %v969 = vrcp.pop %v959
        %v970 = vrcp.pop %v962
        %v971 = vrcp.pop %v965
        %v972 = vrcp.pop %v968
        %v973 = vmul.f32 %v950, %v969
        %v974 = vmul.f32 %v952, %v970
        %v975 = vmul.f32 %v954, %v971
        %v976 = vmul.f32 %v956, %v972
        %v977 = vpack.c.bf16 %v973, %v973
        %v978 = vpack.c.bf16 %v974, %v974
        %v979 = vpack.c.bf16 %v975, %v975
        %v980 = vpack.c.bf16 %v976, %v976
        %981 = vrot.lane.b32.xlu0 %v728, 112
        %v982 = vpop.permute.xlu0 %981
        %v984 = vsel %vm739, %v977, 0
        %vm986 = vcmask 1043456
        %v988 = vsel %vm986, %v982, 0
        %990 = vmatprep.subr.bf16.mxu0 0
        %991 = vmatpush1.bf16.msra.mxu0 %v988
        %992 = vmatprep.subr.bf16.mxu0 0
        %993 = vmatpush1.bf16.msra.mxu0 0
        %994 = vmatprep.subr.bf16.mxu0 0
        %995 = vmatpush1.bf16.msra.mxu0 0
        %996 = vmatprep.subr.bf16.mxu0 0
        %997 = vmatpush1.bf16.msra.mxu0 0
        %998 = vmatprep.subr.bf16.mxu0 0
        %999 = vmatpush1.bf16.msra.mxu0 0
        %1000 = vmatprep.subr.bf16.mxu0 0
        %1001 = vmatpush1.bf16.msra.mxu0 0
        %1002 = vmatprep.subr.bf16.mxu0 0
        %1003 = vmatpush1.bf16.msra.mxu0 0
        %1004 = vmatprep.subr.bf16.mxu0 0
        %1005 = vmatpush1.bf16.msra.mxu0 0
        %1006 = vmatprep.subr.bf16.mxu0 0
        %1007 = vmatpush1.bf16.msra.mxu0 0
        %1008 = vmatprep.subr.bf16.mxu0 0
        %1009 = vmatpush1.bf16.msra.mxu0 0
        %1010 = vmatprep.subr.bf16.mxu0 0
        %1011 = vmatpush1.bf16.msra.mxu0 0
        %1012 = vmatprep.subr.bf16.mxu0 0
        %1013 = vmatpush1.bf16.msra.mxu0 0
        %1014 = vmatprep.subr.bf16.mxu0 0
        %1015 = vmatpush1.bf16.msra.mxu0 0
        %1016 = vmatprep.subr.bf16.mxu0 0
        %1017 = vmatpush1.bf16.msra.mxu0 0
        %1018 = vmatprep.subr.bf16.mxu0 0
        %1019 = vmatpush1.bf16.msra.mxu0 0
        %1020 = vmatprep.subr.bf16.mxu0 0
        %1021 = vmatpush1.bf16.msra.mxu0 0
        %1022 = vmatprep.mubr.bf16.mxu0 0
        %1023 = vmatmul.mubr.bf16.gmra.mrb[0].mxu0 %v984
        %v1024 = vpop.f32.mrb[0].mxu0
        %v1025 = vadd.f32 0.0, %v1024
        %v1026 = vpop.f32.mrb[0].mxu0
        %v1027 = vpop.f32.mrb[0].mxu0
        %v1028 = vpop.f32.mrb[0].mxu0
        %1029 = vdwg.mxu0
        %1030 = vrot.lane.b32.xlu0 %v729, 112
        %v1031 = vpop.permute.xlu0 %1030
        %v1033 = vsel %vm739, %v978, 0
        %v1036 = vsel %vm986, %v1031, 0
        %1038 = vmatprep.subr.bf16.mxu0 0
        %1039 = vmatpush1.bf16.msra.mxu0 %v1036
        %1040 = vmatprep.subr.bf16.mxu0 0
        %1041 = vmatpush1.bf16.msra.mxu0 0
        %1042 = vmatprep.subr.bf16.mxu0 0
        %1043 = vmatpush1.bf16.msra.mxu0 0
        %1044 = vmatprep.subr.bf16.mxu0 0
        %1045 = vmatpush1.bf16.msra.mxu0 0
        %1046 = vmatprep.subr.bf16.mxu0 0
        %1047 = vmatpush1.bf16.msra.mxu0 0
        %1048 = vmatprep.subr.bf16.mxu0 0
        %1049 = vmatpush1.bf16.msra.mxu0 0
        %1050 = vmatprep.subr.bf16.mxu0 0
        %1051 = vmatpush1.bf16.msra.mxu0 0
        %1052 = vmatprep.subr.bf16.mxu0 0
        %1053 = vmatpush1.bf16.msra.mxu0 0
        %1054 = vmatprep.subr.bf16.mxu0 0
        %1055 = vmatpush1.bf16.msra.mxu0 0
        %1056 = vmatprep.subr.bf16.mxu0 0
        %1057 = vmatpush1.bf16.msra.mxu0 0
        %1058 = vmatprep.subr.bf16.mxu0 0
        %1059 = vmatpush1.bf16.msra.mxu0 0
        %1060 = vmatprep.subr.bf16.mxu0 0
        %1061 = vmatpush1.bf16.msra.mxu0 0
        %1062 = vmatprep.subr.bf16.mxu0 0
        %1063 = vmatpush1.bf16.msra.mxu0 0
        %1064 = vmatprep.subr.bf16.mxu0 0
        %1065 = vmatpush1.bf16.msra.mxu0 0
        %1066 = vmatprep.subr.bf16.mxu0 0
        %1067 = vmatpush1.bf16.msra.mxu0 0
        %1068 = vmatprep.subr.bf16.mxu0 0
        %1069 = vmatpush1.bf16.msra.mxu0 0
        %1070 = vmatprep.mubr.bf16.mxu0 0
        %1071 = vmatmul.mubr.bf16.gmra.mrb[0].mxu0 %v1033
        %v1072 = vpop.f32.mrb[0].mxu0
        %v1073 = vadd.f32 0.0, %v1072
        %v1074 = vpop.f32.mrb[0].mxu0
        %v1075 = vpop.f32.mrb[0].mxu0
        %v1076 = vpop.f32.mrb[0].mxu0
        %1077 = vdwg.mxu0
        %1078 = vrot.lane.b32.xlu0 %v730, 112
        %v1079 = vpop.permute.xlu0 %1078
        %v1081 = vsel %vm739, %v979, 0
        %v1084 = vsel %vm986, %v1079, 0
        %1086 = vmatprep.subr.bf16.mxu0 0
        %1087 = vmatpush1.bf16.msra.mxu0 %v1084
        %1088 = vmatprep.subr.bf16.mxu0 0
        %1089 = vmatpush1.bf16.msra.mxu0 0
        %1090 = vmatprep.subr.bf16.mxu0 0
        %1091 = vmatpush1.bf16.msra.mxu0 0
        %1092 = vmatprep.subr.bf16.mxu0 0
        %1093 = vmatpush1.bf16.msra.mxu0 0
        %1094 = vmatprep.subr.bf16.mxu0 0
        %1095 = vmatpush1.bf16.msra.mxu0 0
        %1096 = vmatprep.subr.bf16.mxu0 0
        %1097 = vmatpush1.bf16.msra.mxu0 0
        %1098 = vmatprep.subr.bf16.mxu0 0
        %1099 = vmatpush1.bf16.msra.mxu0 0
        %1100 = vmatprep.subr.bf16.mxu0 0
        %1101 = vmatpush1.bf16.msra.mxu0 0
        %1102 = vmatprep.subr.bf16.mxu0 0
        %1103 = vmatpush1.bf16.msra.mxu0 0
        %1104 = vmatprep.subr.bf16.mxu0 0
        %1105 = vmatpush1.bf16.msra.mxu0 0
        %1106 = vmatprep.subr.bf16.mxu0 0
        %1107 = vmatpush1.bf16.msra.mxu0 0
        %1108 = vmatprep.subr.bf16.mxu0 0
        %1109 = vmatpush1.bf16.msra.mxu0 0
        %1110 = vmatprep.subr.bf16.mxu0 0
        %1111 = vmatpush1.bf16.msra.mxu0 0
        %1112 = vmatprep.subr.bf16.mxu0 0
        %1113 = vmatpush1.bf16.msra.mxu0 0
        %1114 = vmatprep.subr.bf16.mxu0 0
        %1115 = vmatpush1.bf16.msra.mxu0 0
        %1116 = vmatprep.subr.bf16.mxu0 0
        %1117 = vmatpush1.bf16.msra.mxu0 0
        %1118 = vmatprep.mubr.bf16.mxu0 0
        %1119 = vmatmul.mubr.bf16.gmra.mrb[0].mxu0 %v1081
        %v1120 = vpop.f32.mrb[0].mxu0
        %v1121 = vadd.f32 0.0, %v1120
        %v1122 = vpop.f32.mrb[0].mxu0
        %v1123 = vpop.f32.mrb[0].mxu0
        %v1124 = vpop.f32.mrb[0].mxu0
        %1125 = vdwg.mxu0
        %1126 = vrot.lane.b32.xlu0 %v731, 112
        %v1127 = vpop.permute.xlu0 %1126
        %v1129 = vsel %vm739, %v980, 0
        %v1132 = vsel %vm986, %v1127, 0
        %1134 = vmatprep.subr.bf16.mxu0 0
        %1135 = vmatpush1.bf16.msra.mxu0 %v1132
        %1136 = vmatprep.subr.bf16.mxu0 0
        %1137 = vmatpush1.bf16.msra.mxu0 0
        %1138 = vmatprep.subr.bf16.mxu0 0
        %1139 = vmatpush1.bf16.msra.mxu0 0
        %1140 = vmatprep.subr.bf16.mxu0 0
        %1141 = vmatpush1.bf16.msra.mxu0 0
        %1142 = vmatprep.subr.bf16.mxu0 0
        %1143 = vmatpush1.bf16.msra.mxu0 0
        %1144 = vmatprep.subr.bf16.mxu0 0
        %1145 = vmatpush1.bf16.msra.mxu0 0
        %1146 = vmatprep.subr.bf16.mxu0 0
        %1147 = vmatpush1.bf16.msra.mxu0 0
        %1148 = vmatprep.subr.bf16.mxu0 0
        %1149 = vmatpush1.bf16.msra.mxu0 0
        %1150 = vmatprep.subr.bf16.mxu0 0
        %1151 = vmatpush1.bf16.msra.mxu0 0
        %1152 = vmatprep.subr.bf16.mxu0 0
        %1153 = vmatpush1.bf16.msra.mxu0 0
        %1154 = vmatprep.subr.bf16.mxu0 0
        %1155 = vmatpush1.bf16.msra.mxu0 0
        %1156 = vmatprep.subr.bf16.mxu0 0
        %1157 = vmatpush1.bf16.msra.mxu0 0
        %1158 = vmatprep.subr.bf16.mxu0 0
        %1159 = vmatpush1.bf16.msra.mxu0 0
        %1160 = vmatprep.subr.bf16.mxu0 0
        %1161 = vmatpush1.bf16.msra.mxu0 0
        %1162 = vmatprep.subr.bf16.mxu0 0
        %1163 = vmatpush1.bf16.msra.mxu0 0
        %1164 = vmatprep.subr.bf16.mxu0 0
        %1165 = vmatpush1.bf16.msra.mxu0 0
        %1166 = vmatprep.mubr.bf16.mxu0 0
        %1167 = vmatmul.mubr.bf16.gmra.mrb[0].mxu0 %v1129
        %v1168 = vpop.f32.mrb[0].mxu0
        %v1169 = vadd.f32 0.0, %v1168
        %v1170 = vpop.f32.mrb[0].mxu0
        %v1171 = vpop.f32.mrb[0].mxu0
        %v1172 = vpop.f32.mrb[0].mxu0
        %1173 = vdwg.mxu0
        %v1174 = vpack.c.bf16 %v1025, %v1025
        %v1175 = vpack.c.bf16 %v1073, %v1073
        %v1176 = vpack.c.bf16 %v1121, %v1121
        %v1177 = vpack.c.bf16 %v1169, %v1169
        %v1179 = vsel %vm739, %v1174, 0
        %v1182 = vsel %vm986, %v732, 0
        %1184 = vmatprep.subr.bf16.mxu0 0
        %1185 = vmatpush1.bf16.msra.mxu0 %v1182
        %1186 = vmatprep.subr.bf16.mxu0 0
        %1187 = vmatpush1.bf16.msra.mxu0 0
        %1188 = vmatprep.subr.bf16.mxu0 0
        %1189 = vmatpush1.bf16.msra.mxu0 0
        %1190 = vmatprep.subr.bf16.mxu0 0
        %1191 = vmatpush1.bf16.msra.mxu0 0
        %1192 = vmatprep.subr.bf16.mxu0 0
        %1193 = vmatpush1.bf16.msra.mxu0 0
        %1194 = vmatprep.subr.bf16.mxu0 0
        %1195 = vmatpush1.bf16.msra.mxu0 0
        %1196 = vmatprep.subr.bf16.mxu0 0
        %1197 = vmatpush1.bf16.msra.mxu0 0
        %1198 = vmatprep.subr.bf16.mxu0 0
        %1199 = vmatpush1.bf16.msra.mxu0 0
        %1200 = vmatprep.subr.bf16.mxu0 0
        %1201 = vmatpush1.bf16.msra.mxu0 0
        %1202 = vmatprep.subr.bf16.mxu0 0
        %1203 = vmatpush1.bf16.msra.mxu0 0
        %1204 = vmatprep.subr.bf16.mxu0 0
        %1205 = vmatpush1.bf16.msra.mxu0 0
        %1206 = vmatprep.subr.bf16.mxu0 0
        %1207 = vmatpush1.bf16.msra.mxu0 0
        %1208 = vmatprep.subr.bf16.mxu0 0
        %1209 = vmatpush1.bf16.msra.mxu0 0
        %1210 = vmatprep.subr.bf16.mxu0 0
        %1211 = vmatpush1.bf16.msra.mxu0 0
        %1212 = vmatprep.subr.bf16.mxu0 0
        %1213 = vmatpush1.bf16.msra.mxu0 0
        %1214 = vmatprep.subr.bf16.mxu0 0
        %1215 = vmatpush1.bf16.msra.mxu0 0
        %1216 = vmatprep.mubr.bf16.mxu0 0
        %1217 = vmatmul.mubr.bf16.gmra.mrb[0].mxu0 %v1179
        %v1218 = vpop.f32.mrb[0].mxu0
        %v1219 = vadd.f32 0.0, %v1218
        %v1220 = vpop.f32.mrb[0].mxu0
        %v1221 = vpop.f32.mrb[0].mxu0
        %v1222 = vpop.f32.mrb[0].mxu0
        %1223 = vdwg.mxu0
        %v1225 = vsel %vm739, %v1175, 0
        %v1228 = vsel %vm986, %v733, 0
        %1230 = vmatprep.subr.bf16.mxu0 0
        %1231 = vmatpush1.bf16.msra.mxu0 %v1228
        %1232 = vmatprep.subr.bf16.mxu0 0
        %1233 = vmatpush1.bf16.msra.mxu0 0
        %1234 = vmatprep.subr.bf16.mxu0 0
        %1235 = vmatpush1.bf16.msra.mxu0 0
        %1236 = vmatprep.subr.bf16.mxu0 0
        %1237 = vmatpush1.bf16.msra.mxu0 0
        %1238 = vmatprep.subr.bf16.mxu0 0
        %1239 = vmatpush1.bf16.msra.mxu0 0
        %1240 = vmatprep.subr.bf16.mxu0 0
        %1241 = vmatpush1.bf16.msra.mxu0 0
        %1242 = vmatprep.subr.bf16.mxu0 0
        %1243 = vmatpush1.bf16.msra.mxu0 0
        %1244 = vmatprep.subr.bf16.mxu0 0
        %1245 = vmatpush1.bf16.msra.mxu0 0
        %1246 = vmatprep.subr.bf16.mxu0 0
        %1247 = vmatpush1.bf16.msra.mxu0 0
        %1248 = vmatprep.subr.bf16.mxu0 0
        %1249 = vmatpush1.bf16.msra.mxu0 0
        %1250 = vmatprep.subr.bf16.mxu0 0
        %1251 = vmatpush1.bf16.msra.mxu0 0
        %1252 = vmatprep.subr.bf16.mxu0 0
        %1253 = vmatpush1.bf16.msra.mxu0 0
        %1254 = vmatprep.subr.bf16.mxu0 0
        %1255 = vmatpush1.bf16.msra.mxu0 0
        %1256 = vmatprep.subr.bf16.mxu0 0
        %1257 = vmatpush1.bf16.msra.mxu0 0
        %1258 = vmatprep.subr.bf16.mxu0 0
        %1259 = vmatpush1.bf16.msra.mxu0 0
        %1260 = vmatprep.subr.bf16.mxu0 0
        %1261 = vmatpush1.bf16.msra.mxu0 0
        %1262 = vmatprep.mubr.bf16.mxu0 0
        %1263 = vmatmul.mubr.bf16.gmra.mrb[0].mxu0 %v1225
        %v1264 = vpop.f32.mrb[0].mxu0
        %v1265 = vadd.f32 0.0, %v1264
        %v1266 = vpop.f32.mrb[0].mxu0
        %v1267 = vpop.f32.mrb[0].mxu0
        %v1268 = vpop.f32.mrb[0].mxu0
        %1269 = vdwg.mxu0
        %v1271 = vsel %vm739, %v1176, 0
        %v1274 = vsel %vm986, %v734, 0
        %1276 = vmatprep.subr.bf16.mxu0 0
        %1277 = vmatpush1.bf16.msra.mxu0 %v1274
        %1278 = vmatprep.subr.bf16.mxu0 0
        %1279 = vmatpush1.bf16.msra.mxu0 0
        %1280 = vmatprep.subr.bf16.mxu0 0
        %1281 = vmatpush1.bf16.msra.mxu0 0
        %1282 = vmatprep.subr.bf16.mxu0 0
        %1283 = vmatpush1.bf16.msra.mxu0 0
        %1284 = vmatprep.subr.bf16.mxu0 0
        %1285 = vmatpush1.bf16.msra.mxu0 0
        %1286 = vmatprep.subr.bf16.mxu0 0
        %1287 = vmatpush1.bf16.msra.mxu0 0
        %1288 = vmatprep.subr.bf16.mxu0 0
        %1289 = vmatpush1.bf16.msra.mxu0 0
        %1290 = vmatprep.subr.bf16.mxu0 0
        %1291 = vmatpush1.bf16.msra.mxu0 0
        %1292 = vmatprep.subr.bf16.mxu0 0
        %1293 = vmatpush1.bf16.msra.mxu0 0
        %1294 = vmatprep.subr.bf16.mxu0 0
        %1295 = vmatpush1.bf16.msra.mxu0 0
        %1296 = vmatprep.subr.bf16.mxu0 0
        %1297 = vmatpush1.bf16.msra.mxu0 0
        %1298 = vmatprep.subr.bf16.mxu0 0
        %1299 = vmatpush1.bf16.msra.mxu0 0
        %1300 = vmatprep.subr.bf16.mxu0 0
        %1301 = vmatpush1.bf16.msra.mxu0 0
        %1302 = vmatprep.subr.bf16.mxu0 0
        %1303 = vmatpush1.bf16.msra.mxu0 0
        %1304 = vmatprep.subr.bf16.mxu0 0
        %1305 = vmatpush1.bf16.msra.mxu0 0
        %1306 = vmatprep.subr.bf16.mxu0 0
        %1307 = vmatpush1.bf16.msra.mxu0 0
        %1308 = vmatprep.mubr.bf16.mxu0 0
        %1309 = vmatmul.mubr.bf16.gmra.mrb[0].mxu0 %v1271
        %v1310 = vpop.f32.mrb[0].mxu0
        %v1311 = vadd.f32 0.0, %v1310
        %v1312 = vpop.f32.mrb[0].mxu0
        %v1313 = vpop.f32.mrb[0].mxu0
        %v1314 = vpop.f32.mrb[0].mxu0
        %1315 = vdwg.mxu0
        %v1317 = vsel %vm739, %v1177, 0
        %v1320 = vsel %vm986, %v735, 0
        %1322 = vmatprep.subr.bf16.mxu0 0
        %1323 = vmatpush1.bf16.msra.mxu0 %v1320
        %1324 = vmatprep.subr.bf16.mxu0 0
        %1325 = vmatpush1.bf16.msra.mxu0 0
        %1326 = vmatprep.subr.bf16.mxu0 0
        %1327 = vmatpush1.bf16.msra.mxu0 0
        %1328 = vmatprep.subr.bf16.mxu0 0
        %1329 = vmatpush1.bf16.msra.mxu0 0
        %1330 = vmatprep.subr.bf16.mxu0 0
        %1331 = vmatpush1.bf16.msra.mxu0 0
        %1332 = vmatprep.subr.bf16.mxu0 0
        %1333 = vmatpush1.bf16.msra.mxu0 0
        %1334 = vmatprep.subr.bf16.mxu0 0
        %1335 = vmatpush1.bf16.msra.mxu0 0
        %1336 = vmatprep.subr.bf16.mxu0 0
        %1337 = vmatpush1.bf16.msra.mxu0 0
        %1338 = vmatprep.subr.bf16.mxu0 0
        %1339 = vmatpush1.bf16.msra.mxu0 0
        %1340 = vmatprep.subr.bf16.mxu0 0
        %1341 = vmatpush1.bf16.msra.mxu0 0
        %1342 = vmatprep.subr.bf16.mxu0 0
        %1343 = vmatpush1.bf16.msra.mxu0 0
        %1344 = vmatprep.subr.bf16.mxu0 0
        %1345 = vmatpush1.bf16.msra.mxu0 0
        %1346 = vmatprep.subr.bf16.mxu0 0
        %1347 = vmatpush1.bf16.msra.mxu0 0
        %1348 = vmatprep.subr.bf16.mxu0 0
        %1349 = vmatpush1.bf16.msra.mxu0 0
        %1350 = vmatprep.subr.bf16.mxu0 0
        %1351 = vmatpush1.bf16.msra.mxu0 0
        %1352 = vmatprep.subr.bf16.mxu0 0
        %1353 = vmatpush1.bf16.msra.mxu0 0
        %1354 = vmatprep.mubr.bf16.mxu0 0
        %1355 = vmatmul.mubr.bf16.gmra.mrb[0].mxu0 %v1317
        %v1356 = vpop.f32.mrb[0].mxu0
        %v1357 = vadd.f32 0.0, %v1356
        %v1358 = vpop.f32.mrb[0].mxu0
        %v1359 = vpop.f32.mrb[0].mxu0
        %v1360 = vpop.f32.mrb[0].mxu0
        %1361 = vdwg.mxu0
        %v1362 = vsel %vm438, %v1219, 0.0
        %v1363 = vsel %vm438, %v1265, 0.0
        %v1364 = vadd.f32 %v1362, %v1363
        %v1365 = vsel %vm438, %v1311, 0.0
        %v1366 = vadd.f32 %v1364, %v1365
        %v1367 = vsel %vm438, %v1357, 0.0
        %v1368 = vadd.f32 %v1366, %v1367
        %v1369 = vld [vmem:[%s6] sm:$0x1]
        %v1371 = vlaneseq
        %v1372 = vshrl.u32 %v1371, 7
        %v1373 = vsub.s32 0, %v1372
        %v1374 = vrot.slane %v1369, %v1373
        %v1376 = vadd.f32 %v1368, %v1374
        %v1377 = vadd.f32 %v1376, %v437
        %v1378 = vsel %vm438, %v1377, 0.0
        %1379 = vadd.xlane.f32.xlu0 %v1378
        %v1380 = vpop.xlane.xlu0 %1379
        %v1381 = vmul.f32 %v1380, %v442
        %v1382 = vmul.f32 %v1377, %v1377
        %v1383 = vsel %vm438, %v1382, 0.0
        %1384 = vadd.xlane.f32.xlu0 %v1383
        %v1385 = vpop.xlane.xlu0 %1384
        %v1386 = vmul.f32 %v1385, %v442
        %v1387 = vmul.f32 %v1381, %v1381
        %v1388 = vsub.f32 %v1386, %v1387
        %v1389 = vmax.f32 %v1388, 0.0
        %v1390 = vsub.f32 %v1377, %v1381
        %v1391 = vadd.f32 %v1389, 1e-05
        %v1392 = vrsqrt.pop %v1391
        %v1393 = vmul.f32 %v1390, %v1392
        %v1394 = vld [vmem:[%s7] sm:$0x1]
        %v1396 = vlaneseq
        %v1397 = vshrl.u32 %v1396, 7
        %v1398 = vsub.s32 0, %v1397
        %v1399 = vrot.slane %v1394, %v1398
        %v1401 = vmul.f32 %v1393, %v1399
        %v1402 = vld [vmem:[%s8] sm:$0x1]
        %v1404 = vlaneseq
        %v1405 = vshrl.u32 %v1404, 7
        %v1406 = vsub.s32 0, %v1405
        %v1407 = vrot.slane %v1402, %v1406
        %v1409 = vadd.f32 %v1401, %v1407
        %v1410 = vpack.c.bf16 %v1409, %v1409
        %v1411 = vld [vmem:[%s9] sm:$0xf]
        %v1412 = vld [vmem:[%s9 + $0x4] sm:$0xf]
        %v1413 = vld [vmem:[%s9 + $0x8] sm:$0xf]
        %v1414 = vld [vmem:[%s9 + $0xc] sm:$0xf]
        %v1415 = vld [vmem:[%s10] sm:$0x1]
        %v1417 = vlaneseq
        %v1418 = vshrl.u32 %v1417, 7
        %v1419 = vsub.s32 0, %v1418
        %v1420 = vrot.slane %v1415, %v1419
        %v1426 = vunpack.c.l.b16 %v1411
        %v1427 = vunpack.c.l.b16 %v1412
        %v1428 = vunpack.c.l.b16 %v1413
        %v1429 = vunpack.c.l.b16 %v1414
        %v1430 = vpack.c.b16 %v1427, %v1426
        %v1431 = vpack.c.b16 %v1429, %v1428
        %v1435 = vsel %vm438, %v1410, 0
        %1437 = vmatprep.subr.bf16.mxu0 0
        %1438 = vmatpush1.bf16.msra.mxu0 %v1430
        %1439 = vmatprep.subr.bf16.mxu0 0
        %1440 = vmatpush1.bf16.msra.mxu0 %v1431
        %1441 = vmatprep.subr.bf16.mxu0 0
        %1442 = vmatpush1.bf16.msra.mxu0 0
        %1443 = vmatprep.subr.bf16.mxu0 0
        %1444 = vmatpush1.bf16.msra.mxu0 0
        %1445 = vmatprep.subr.bf16.mxu0 0
        %1446 = vmatpush1.bf16.msra.mxu0 0
        %1447 = vmatprep.subr.bf16.mxu0 0
        %1448 = vmatpush1.bf16.msra.mxu0 0
        %1449 = vmatprep.subr.bf16.mxu0 0
        %1450 = vmatpush1.bf16.msra.mxu0 0
        %1451 = vmatprep.subr.bf16.mxu0 0
        %1452 = vmatpush1.bf16.msra.mxu0 0
        %1453 = vmatprep.subr.bf16.mxu0 0
        %1454 = vmatpush1.bf16.msra.mxu0 0
        %1455 = vmatprep.subr.bf16.mxu0 0
        %1456 = vmatpush1.bf16.msra.mxu0 0
        %1457 = vmatprep.subr.bf16.mxu0 0
        %1458 = vmatpush1.bf16.msra.mxu0 0
        %1459 = vmatprep.subr.bf16.mxu0 0
        %1460 = vmatpush1.bf16.msra.mxu0 0
        %1461 = vmatprep.subr.bf16.mxu0 0
        %1462 = vmatpush1.bf16.msra.mxu0 0
        %1463 = vmatprep.subr.bf16.mxu0 0
        %1464 = vmatpush1.bf16.msra.mxu0 0
        %1465 = vmatprep.subr.bf16.mxu0 0
        %1466 = vmatpush1.bf16.msra.mxu0 0
        %1467 = vmatprep.subr.bf16.mxu0 0
        %1468 = vmatpush1.bf16.msra.mxu0 0
        %1469 = vmatprep.mubr.bf16.mxu0 0
        %1470 = vmatmul.mubr.bf16.gmra.mrb[0].mxu0 %v1435
        %v1471 = vpop.f32.mrb[0].mxu0
        %v1472 = vadd.f32 %v1420, %v1471
        %v1473 = vpop.f32.mrb[0].mxu0
        %v1474 = vpop.f32.mrb[0].mxu0
        %v1475 = vpop.f32.mrb[0].mxu0
        %1476 = vdwg.mxu0
        %v1477 = vmax.f32 %v1472, 0.0
        %v1478 = vpack.c.bf16 %v1477, %v1477
        %v1479 = vld [vmem:[%s11] sm:$0xf]
        %v1480 = vld [vmem:[%s11 + $0x4] sm:$0xf]
        %v1481 = vld [vmem:[%s11 + $0x8] sm:$0xf]
        %v1482 = vld [vmem:[%s11 + $0xc] sm:$0xf]
        %v1483 = vld [vmem:[%s11 + $0x10] sm:$0xf]
        %v1484 = vld [vmem:[%s11 + $0x14] sm:$0xf]
        %v1485 = vld [vmem:[%s11 + $0x18] sm:$0xf]
        %v1486 = vld [vmem:[%s11 + $0x1c] sm:$0xf]
        %v1487 = vld [vmem:[%s12] sm:$0x1]
        %v1489 = vlaneseq
        %v1490 = vshrl.u32 %v1489, 7
        %v1491 = vsub.s32 0, %v1490
        %v1492 = vrot.slane %v1487, %v1491
        %v1502 = vunpack.c.l.b16 %v1479
        %v1503 = vunpack.c.l.b16 %v1480
        %v1504 = vunpack.c.l.b16 %v1481
        %v1505 = vunpack.c.l.b16 %v1482
        %v1506 = vunpack.c.l.b16 %v1483
        %v1507 = vunpack.c.l.b16 %v1484
        %v1508 = vunpack.c.l.b16 %v1485
        %v1509 = vunpack.c.l.b16 %v1486
        %v1510 = vpack.c.b16 %v1503, %v1502
        %v1511 = vpack.c.b16 %v1505, %v1504
        %v1512 = vpack.c.b16 %v1507, %v1506
        %v1513 = vpack.c.b16 %v1509, %v1508
        %vm1518 = vcmask 523264
        %v1520 = vsel %vm1518, %v1478, 0
        %1522 = vmatprep.subr.bf16.mxu0 0
        %1523 = vmatpush1.bf16.msra.mxu0 %v1510
        %1524 = vmatprep.subr.bf16.mxu0 0
        %1525 = vmatpush1.bf16.msra.mxu0 %v1511
        %1526 = vmatprep.subr.bf16.mxu0 0
        %1527 = vmatpush1.bf16.msra.mxu0 %v1512
        %1528 = vmatprep.subr.bf16.mxu0 0
        %1529 = vmatpush1.bf16.msra.mxu0 %v1513
        %1530 = vmatprep.subr.bf16.mxu0 0
        %1531 = vmatpush1.bf16.msra.mxu0 0
        %1532 = vmatprep.subr.bf16.mxu0 0
        %1533 = vmatpush1.bf16.msra.mxu0 0
        %1534 = vmatprep.subr.bf16.mxu0 0
        %1535 = vmatpush1.bf16.msra.mxu0 0
        %1536 = vmatprep.subr.bf16.mxu0 0
        %1537 = vmatpush1.bf16.msra.mxu0 0
        %1538 = vmatprep.subr.bf16.mxu0 0
        %1539 = vmatpush1.bf16.msra.mxu0 0
        %1540 = vmatprep.subr.bf16.mxu0 0
        %1541 = vmatpush1.bf16.msra.mxu0 0
        %1542 = vmatprep.subr.bf16.mxu0 0
        %1543 = vmatpush1.bf16.msra.mxu0 0
        %1544 = vmatprep.subr.bf16.mxu0 0
        %1545 = vmatpush1.bf16.msra.mxu0 0
        %1546 = vmatprep.subr.bf16.mxu0 0
        %1547 = vmatpush1.bf16.msra.mxu0 0
        %1548 = vmatprep.subr.bf16.mxu0 0
        %1549 = vmatpush1.bf16.msra.mxu0 0
        %1550 = vmatprep.subr.bf16.mxu0 0
        %1551 = vmatpush1.bf16.msra.mxu0 0
        %1552 = vmatprep.subr.bf16.mxu0 0
        %1553 = vmatpush1.bf16.msra.mxu0 0
        %1554 = vmatprep.mubr.bf16.mxu0 0
        %1555 = vmatmul.mubr.bf16.gmra.mrb[0].mxu0 %v1520
        %v1556 = vpop.f32.mrb[0].mxu0
        %v1557 = vadd.f32 %v1492, %v1556
        %v1558 = vpop.f32.mrb[0].mxu0
        %v1559 = vpop.f32.mrb[0].mxu0
        %v1560 = vpop.f32.mrb[0].mxu0
        %1561 = vdwg.mxu0
        %v1562 = vadd.f32 %v1377, %v1557
        %1563 = vst.msk [vmem:[%s431] sm:$0xff] %vm438, %v1562
        %s1564 = sand.u32 %s313, 1
        %s1565 = scalar_lea.sflag [#allocation3], %s1564
        %s1566 = sand.u32 %s313, 1
        %s1567 = smul.addr %s1566, 8
        %s1568 = scalar_lea.vmem [#allocation2], %s1567
        // Predicated region
        $region73: #{tpu_custom_call.1} parent=71 // pred_check
          %p1569 = pneg %p323
        $region74: #{tpu_custom_call.1} parent=71 // pred_check_branch
          %1571 = sbr.rel (%p1569) target = $region76
        $region75: #{tpu_custom_call.1} parent=71 // pred_region
          %s1573 = ssub.s32 128, 128
          %1574 = vsyncadd %s1565, %s1573
          %s1575 = smul.addr %s27, 128
          %s1576 = scalar_lea.hbm %s13, %s1575
          %s1578 = sshll.u32 %s1568, 4
          %s1579 = int_to_ptr.vmem [resolvable:$true] %s1578
          %1581 = dma.vmem_to_hbm [thread:$0]  %s1579, 128, %s1576, %s1565
        $region76: #{tpu_custom_call.1} parent=71 // pred_fallthru
          _
      $region72: #{tpu_custom_call.1} parent=5 // pred_fallthru
        _
      %p1582 = scmp.le.s32.totalorder 2, %s22
      // Predicated region
      $region77: #{tpu_custom_call.1} parent=5 // pred_check
        %p1583 = pneg %p1582
      $region78: #{tpu_custom_call.1} parent=5 // pred_check_branch
        %1585 = sbr.rel (%p1583) target = $region80
      $region79: #{tpu_custom_call.1} parent=5 // pred_region
        %s1586 = ssub.s32 %s22, 2
        // Predicated region
        $region81: #{tpu_custom_call.1} parent=79 // pred_check
          %p1587 = pneg %p329
        $region82: #{tpu_custom_call.1} parent=79 // pred_check_branch
          %1589 = sbr.rel (%p1587) target = $region84
        $region83: #{tpu_custom_call.1} parent=79 // pred_region
          %s1590 = sand.u32 %s314, 1
          %s1591 = scalar_lea.sflag [#allocation3], %s1590
          %s1592 = sand.u32 %s314, 1
          %s1593 = smul.addr %s1592, 8
          %s1594 = scalar_lea.vmem [#allocation2], %s1593
          %1595 = dma.done %s1591, 128
        $region84: #{tpu_custom_call.1} parent=79 // pred_fallthru
          _
      $region80: #{tpu_custom_call.1} parent=5 // pred_fallthru
        _
    $region6: #{tpu_custom_call.1} parent=1 // loop_footer
      %s26 = sadd.s32 1, %s22
    $region7: #{tpu_custom_call.1} parent=1 // loop_footer_branch
      %21 = sbr.rel target = $region3
    $region8: #{tpu_custom_call.1} parent=1 // loop_exit
      _
    %1596 = vsyncpa [#allocation3], 1
    %s1597 = scalar_lea.sflag [#allocation3], 1
    %1598 = vsyncpa %s1597, 1

</llo_original>
